<compile_context>
chip_gen: v5e
topology: v5e:2x2
jax: 0.10.0
libtpu: 0.0.40
codegen_flags: <defaults>
</compile_context>

<pallas_src>
import functools
import math

import jax
import jax.numpy as jnp
from jax.experimental import pallas as pl
from jax.experimental.pallas import tpu as pltpu

NEG_SLOPE = 0.01  # LeakyReLU slope (args.activation == 'LeakyReLU')


def _vmem_spec(shape):
    """Whole-array VMEM BlockSpec for a grid=(1,) pallas_call."""
    nd = len(shape)
    return pl.BlockSpec(shape, lambda i, _nd=nd: (0,) * _nd)


_SMEM_SPEC = pl.BlockSpec(memory_space=pltpu.MemorySpace.SMEM)


# ---------------------------------------------------------------------------
# Fused forward kernel: the whole MODEL.forward in one pallas_call.
# ---------------------------------------------------------------------------
def _model_kernel(
    # SMEM scalars
    mix_ref,            # (2,)          [a_u, a_i]
    auu_ref,            # (flayers+1,)  softmax(auu[:flayers+1])
    aii_ref,            # (flayers+1,)  softmax(aii[:flayers+1])
    # VMEM tensors
    adj_uu_ref,         # (U, U)
    adj_ii_ref,         # (I, I)
    adj_ui_ref,         # (T, T), T = U + I
    user0_ref,          # (U, H)
    item0_ref,          # (I, H)
    pw1_uu_ref, pw2_uu_ref,      # (H, HH)
    pw1_iti_ref, pw2_iti_ref,    # (H, HH)
    pb_uu_ref, pb_iti_ref,       # (1, HH)
    iw1_uu_ref, iw2_uu_ref,      # (HH, H)
    iw1_iti_ref, iw2_iti_ref,    # (HH, H)
    ib_uu_ref, ib_iti_ref,       # (1, H)
    # outputs
    user_out_ref,       # (U, H)
    item_out_ref,       # (I, H)
    reg_out_ref,        # (1, 1)
    *, layer_nums, flayers, user_num,
):
    hide_dim = user0_ref.shape[1]
    hete_dim = pw1_uu_ref.shape[1]

    # ---- one-time per-forward preprocessing (hoisted out of all hops) ----
    def d_inv_sqrt(a):
        rs = jnp.sum(a, axis=1, keepdims=True)                    # rowsum (N,1)
        safe = jnp.where(rs > 0.0, rs, 1.0)
        return jnp.where(rs > 0.0, jax.lax.rsqrt(safe), 0.0)      # D^-1/2

    adj_uu = adj_uu_ref[...]
    adj_ii = adj_ii_ref[...]
    adj_ui = adj_ui_ref[...]
    d_uu = d_inv_sqrt(adj_uu)
    d_ii = d_inv_sqrt(adj_ii)
    d_ui = d_inv_sqrt(adj_ui)

    # Merge [W1 | W2] once so each gated projection is a single MXU pass.
    w_proj_uu = jnp.concatenate([pw1_uu_ref[...], pw2_uu_ref[...]], axis=1)    # (H, 2HH)
    w_proj_iti = jnp.concatenate([pw1_iti_ref[...], pw2_iti_ref[...]], axis=1)
    w_inv_uu = jnp.concatenate([iw1_uu_ref[...], iw2_uu_ref[...]], axis=1)     # (HH, 2H)
    w_inv_iti = jnp.concatenate([iw1_iti_ref[...], iw2_iti_ref[...]], axis=1)
    b_proj_uu = pb_uu_ref[...]
    b_proj_iti = pb_iti_ref[...]
    b_inv_uu = ib_uu_ref[...]
    b_inv_iti = ib_iti_ref[...]

    # ---- fused building blocks ----
    def gcn(adj, d, x):
        # D^-1/2 A D^-1/2 @ x  ==  d * (A @ (d * x))   (no transpose needed)
        return d * jnp.dot(adj, d * x, preferred_element_type=jnp.float32)

    def gated_proj(e, w12, b, d_out):
        gv = jnp.dot(e, w12, preferred_element_type=jnp.float32)  # (N, 2*d_out)
        gate = gv[:, :d_out] + b
        gate = jnp.where(gate >= 0.0, gate, NEG_SLOPE * gate)     # LeakyReLU
        return gv[:, d_out:] * gate

    def hete_gcn(feats, adj, d, a_ref):
        result = a_ref[0] * feats
        hide = feats
        for j in range(flayers):
            hide = gcn(adj, d, hide)
            result = result + a_ref[j + 1] * hide
        return result

    def l2norm(x):
        nrm = jnp.sqrt(jnp.sum(x * x, axis=1, keepdims=True))
        # F.normalize(p=2, dim=1, eps=1e-12); divide moved to EUP reciprocal.
        return x * pl.reciprocal(jnp.maximum(nrm, 1e-12), approx=False)

    # ---- forward ----
    user0 = user0_ref[...]
    item0 = item0_ref[...]
    a_u = mix_ref[0]
    a_i = mix_ref[1]

    uu_e = gated_proj(user0, w_proj_uu, b_proj_uu, hete_dim)
    iti_e = gated_proj(item0, w_proj_iti, b_proj_iti, hete_dim)

    ui_user = user0
    ui_item = item0
    user_acc = user0          # running sum for the layer-mean
    item_acc = item0

    for _ in range(layer_nums):
        uu_e = hete_gcn(uu_e, adj_uu, d_uu, auu_ref)
        iti_e = hete_gcn(iti_e, adj_ii, d_ii, aii_ref)
        ui_e0 = gcn(adj_ui, d_ui, jnp.concatenate([ui_user, ui_item], axis=0))

        user_hete = gated_proj(uu_e, w_inv_uu, b_inv_uu, hide_dim)
        item_hete = gated_proj(iti_e, w_inv_iti, b_inv_iti, hide_dim)

        user_ed = a_u * ui_e0[:user_num] + (1.0 - a_u) * user_hete
        item_ed = a_i * ui_e0[user_num:] + (1.0 - a_i) * item_hete

        uu_e = gated_proj(user_ed, w_proj_uu, b_proj_uu, hete_dim)
        iti_e = gated_proj(item_ed, w_proj_iti, b_proj_iti, hete_dim)

        ui_user = user_ed
        ui_item = item_ed
        user_acc = user_acc + l2norm(user_ed)
        item_acc = item_acc + l2norm(item_ed)

    inv_cnt = 1.0 / float(layer_nums + 1)
    user_out_ref[...] = user_acc * inv_cnt
    item_out_ref[...] = item_acc * inv_cnt

    # proj L2 penalty (weights are already VMEM-resident)
    def sumsq(w):  # (1,1), keepdims at every stage to stay 2-D
        return jnp.sum(jnp.sum(w * w, axis=1, keepdims=True), axis=0, keepdims=True)

    reg_out_ref[...] = 0.5 * (sumsq(w_proj_uu) + sumsq(w_proj_iti)
                              + sumsq(w_inv_uu) + sumsq(w_inv_iti))


# ---------------------------------------------------------------------------
# Wrapper: one pallas_call per forward.
# ---------------------------------------------------------------------------
def model_forward(params, adj_uu, adj_ii, adj_ui, *, user_num, item_num,
                  layer_nums, flayers):
    hide_dim = params["user_emb"].shape[1]
    hete_dim = params["proj_w1_uu"].shape[1]
    total = user_num + item_num

    # Tiny parameter transforms (3-element softmaxes, 2-scalar concat).
    auu = jax.nn.softmax(params["auu"][: flayers + 1]).astype(jnp.float32)
    aii = jax.nn.softmax(params["aii"][: flayers + 1]).astype(jnp.float32)
    mix = jnp.concatenate([params["a_u"], params["a_i"]]).astype(jnp.float32)

    kernel = functools.partial(_model_kernel, layer_nums=layer_nums,
                               flayers=flayers, user_num=user_num)

    out_shapes = (
        jax.ShapeDtypeStruct((user_num, hide_dim), jnp.float32),
        jax.ShapeDtypeStruct((item_num, hide_dim), jnp.float32),
        jax.ShapeDtypeStruct((1, 1), jnp.float32),
    )

    in_specs = [
        _SMEM_SPEC, _SMEM_SPEC, _SMEM_SPEC,
        _vmem_spec((user_num, user_num)),
        _vmem_spec((item_num, item_num)),
        _vmem_spec((total, total)),
        _vmem_spec((user_num, hide_dim)),
        _vmem_spec((item_num, hide_dim)),
        _vmem_spec((hide_dim, hete_dim)), _vmem_spec((hide_dim, hete_dim)),
        _vmem_spec((hide_dim, hete_dim)), _vmem_spec((hide_dim, hete_dim)),
        _vmem_spec((1, hete_dim)), _vmem_spec((1, hete_dim)),
        _vmem_spec((hete_dim, hide_dim)), _vmem_spec((hete_dim, hide_dim)),
        _vmem_spec((hete_dim, hide_dim)), _vmem_spec((hete_dim, hide_dim)),
        _vmem_spec((1, hide_dim)), _vmem_spec((1, hide_dim)),
    ]
    out_specs = (
        _vmem_spec((user_num, hide_dim)),
        _vmem_spec((item_num, hide_dim)),
        _vmem_spec((1, 1)),
    )

    # Advisory cost estimate for XLA scheduling around the fused custom call.
    mm = lambda m, k, n: 2 * m * k * n
    flops = (mm(user_num, hide_dim, 2 * hete_dim) + mm(item_num, hide_dim, 2 * hete_dim)
             + layer_nums * (
                 flayers * (mm(user_num, user_num, hete_dim)
                            + mm(item_num, item_num, hete_dim))
                 + mm(total, total, hide_dim)
                 + mm(user_num, hete_dim, 2 * hide_dim)
                 + mm(item_num, hete_dim, 2 * hide_dim)
                 + mm(user_num, hide_dim, 2 * hete_dim)
                 + mm(item_num, hide_dim, 2 * hete_dim)))
    bytes_accessed = 4 * (user_num * user_num + item_num * item_num + total * total
                          + 3 * total * hide_dim
                          + 8 * hide_dim * hete_dim + 2 * hete_dim + 2 * hide_dim)
    transcendentals = 2 * total + layer_nums * 2 * total

    user_emb, item_emb, reg = pl.pallas_call(
        kernel,
        out_shape=out_shapes,
        grid=(1,),
        in_specs=in_specs,
        out_specs=out_specs,
        compiler_params=pltpu.CompilerParams(dimension_semantics=("arbitrary",)),
        cost_estimate=pl.CostEstimate(flops=int(flops),
                                      transcendentals=int(transcendentals),
                                      bytes_accessed=int(bytes_accessed)),
    )(mix, auu, aii, adj_uu, adj_ii, adj_ui,
      params["user_emb"], params["item_emb"],
      params["proj_w1_uu"], params["proj_w2_uu"],
      params["proj_w1_iti"], params["proj_w2_iti"],
      params["proj_b_uu"], params["proj_b_iti"],
      params["inv_proj_w1_uu"], params["inv_proj_w2_uu"],
      params["inv_proj_w1_iti"], params["inv_proj_w2_iti"],
      params["inv_proj_b_uu"], params["inv_proj_b_iti"])

    return user_emb, item_emb, reg[0, 0]


# ---------------------------------------------------------------------------
# Pure-JAX reference (for a tolerance check of the fused kernel).
# ---------------------------------------------------------------------------
def reference_forward(params, adj_uu, adj_ii, adj_ui, *, user_num, item_num,
                      layer_nums, flayers):
    hp = jax.lax.Precision.HIGHEST

    def norm_adj_mm(adj, x):
        rs = jnp.sum(adj, axis=1, keepdims=True)
        d = jnp.where(rs > 0.0, jax.lax.rsqrt(jnp.where(rs > 0.0, rs, 1.0)), 0.0)
        return d * jnp.dot(adj, d * x, precision=hp)

    def proj(e, w1, w2, b):
        gate = jnp.dot(e, w1, precision=hp) + b
        gate = jnp.where(gate >= 0.0, gate, NEG_SLOPE * gate)
        return jnp.dot(e, w2, precision=hp) * gate

    def hete(f, adj, a_raw):
        a = jax.nn.softmax(a_raw[: flayers + 1])
        res = a[0] * f
        h = f
        for j in range(flayers):
            h = norm_adj_mm(adj, h)
            res = res + a[j + 1] * h
        return res

    def l2n(x):
        n = jnp.sqrt(jnp.sum(x * x, axis=1, keepdims=True))
        return x / jnp.maximum(n, 1e-12)

    user0, item0 = params["user_emb"], params["item_emb"]
    uu_e = proj(user0, params["proj_w1_uu"], params["proj_w2_uu"], params["proj_b_uu"])
    iti_e = proj(item0, params["proj_w1_iti"], params["proj_w2_iti"], params["proj_b_iti"])
    a_u, a_i = params["a_u"][0], params["a_i"][0]
    all_u, all_i = [user0], [item0]
    ui_e = jnp.concatenate([user0, item0], axis=0)
    for _ in range(layer_nums):
        uu_e = hete(uu_e, adj_uu, params["auu"])
        iti_e = hete(iti_e, adj_ii, params["aii"])
        ui_e0 = norm_adj_mm(adj_ui, ui_e)
        uh = proj(uu_e, params["inv_proj_w1_uu"], params["inv_proj_w2_uu"], params["inv_proj_b_uu"])
        ih = proj(iti_e, params["inv_proj_w1_iti"], params["inv_proj_w2_iti"], params["inv_proj_b_iti"])
        u_ed = a_u * ui_e0[:user_num] + (1.0 - a_u) * uh
        i_ed = a_i * ui_e0[user_num:] + (1.0 - a_i) * ih
        uu_e = proj(u_ed, params["proj_w1_uu"], params["proj_w2_uu"], params["proj_b_uu"])
        iti_e = proj(i_ed, params["proj_w1_iti"], params["proj_w2_iti"], params["proj_b_iti"])
        ui_e = jnp.concatenate([u_ed, i_ed], axis=0)
        all_u.append(l2n(u_ed))
        all_i.append(l2n(i_ed))
    user_emb = jnp.mean(jnp.stack(all_u, axis=1), axis=1)
    item_emb = jnp.mean(jnp.stack(all_i, axis=1), axis=1)
    reg = 0.5 * sum(jnp.sum(params[k] ** 2) for k in [
        "proj_w1_uu", "proj_w1_iti", "inv_proj_w1_uu", "inv_proj_w1_iti",
        "proj_w2_uu", "proj_w2_iti", "inv_proj_w2_uu", "inv_proj_w2_iti"])
    return user_emb, item_emb, reg


# ---------------------------------------------------------------------------
# Deterministic parameter / input construction
# ---------------------------------------------------------------------------
def xavier_uniform(key, shape):
    fan_in, fan_out = shape[0], shape[1]
    bound = math.sqrt(6.0 / (fan_in + fan_out))
    return jax.random.uniform(key, shape, jnp.float32, -bound, bound)


def build_params(key, user_num, item_num, hide_dim, hete_hide_dim):
    keys = jax.random.split(key, 16)
    return {
        "user_emb":        xavier_uniform(keys[0], (user_num, hide_dim)),
        "item_emb":        xavier_uniform(keys[1], (item_num, hide_dim)),
        "proj_w1_uu":      xavier_uniform(keys[2], (hide_dim, hete_hide_dim)),
        "proj_w2_uu":      xavier_uniform(keys[3], (hide_dim, hete_hide_dim)),
        "proj_w1_iti":     xavier_uniform(keys[4], (hide_dim, hete_hide_dim)),
        "proj_w2_iti":     xavier_uniform(keys[5], (hide_dim, hete_hide_dim)),
        "proj_b_uu":       xavier_uniform(keys[6], (1, hete_hide_dim)),
        "proj_b_iti":      xavier_uniform(keys[7], (1, hete_hide_dim)),
        "inv_proj_w1_uu":  xavier_uniform(keys[8], (hete_hide_dim, hide_dim)),
        "inv_proj_w2_uu":  xavier_uniform(keys[9], (hete_hide_dim, hide_dim)),
        "inv_proj_w1_iti": xavier_uniform(keys[10], (hete_hide_dim, hide_dim)),
        "inv_proj_w2_iti": xavier_uniform(keys[11], (hete_hide_dim, hide_dim)),
        "inv_proj_b_uu":   xavier_uniform(keys[12], (1, hide_dim)),
        "inv_proj_b_iti":  xavier_uniform(keys[13], (1, hide_dim)),
        "a_u":             jnp.array([0.5], jnp.float32),
        "a_i":             jnp.array([0.5], jnp.float32),
        "auu":             jnp.array([1.0, 3.0, 3.0], jnp.float32),
        "aii":             jnp.array([1.0, 3.0, 3.0], jnp.float32),
    }


def build_adjacencies(key, user_num, item_num):
    k1, k2, k3 = jax.random.split(key, 3)
    uu = jax.random.bernoulli(k1, 0.3, (user_num, user_num)).astype(jnp.float32)
    uu = jnp.maximum(uu, uu.T)
    ii = jax.random.bernoulli(k2, 0.3, (item_num, item_num)).astype(jnp.float32)
    ii = jnp.maximum(ii, ii.T)
    r = jax.random.bernoulli(k3, 0.3, (user_num, item_num)).astype(jnp.float32)
    ui = jnp.block([[jnp.zeros((user_num, user_num), jnp.float32), r],
                    [r.T, jnp.zeros((item_num, item_num), jnp.float32)]])
    return uu, ii, ui


if __name__ == "__main__":
    USER_NUM = 16
    ITEM_NUM = 24
    HIDE_DIM = 32
    HETE_HIDE_DIM = 16
    LAYERS = 2
    FLAYERS = 2

    root = jax.random.PRNGKey(0)
    k_params, k_adj = jax.random.split(root)
    params = build_params(k_params, USER_NUM, ITEM_NUM, HIDE_DIM, HETE_HIDE_DIM)
    adj_uu, adj_ii, adj_ui = build_adjacencies(k_adj, USER_NUM, ITEM_NUM)

    fwd = jax.jit(functools.partial(model_forward,
                                    user_num=USER_NUM, item_num=ITEM_NUM,
                                    layer_nums=LAYERS, flayers=FLAYERS))

    user_emb, item_emb, reg_loss = fwd(params, adj_uu, adj_ii, adj_ui)
    jax.block_until_ready((user_emb, item_emb, reg_loss))

    # Correctness check vs. pure-JAX reference (loose tolerance for matmul
    # precision-mode differences between MXU and XLA paths).
    ref_u, ref_i, ref_r = reference_forward(
        params, adj_uu, adj_ii, adj_ui, user_num=USER_NUM, item_num=ITEM_NUM,
        layer_nums=LAYERS, flayers=FLAYERS)

    assert user_emb.shape == (USER_NUM, HIDE_DIM)
    assert item_emb.shape == (ITEM_NUM, HIDE_DIM)
    assert jnp.all(jnp.isfinite(user_emb)) and jnp.all(jnp.isfinite(item_emb))
    assert jnp.isfinite(reg_loss)
    assert jnp.allclose(user_emb, ref_u, rtol=5e-3, atol=5e-3)
    assert jnp.allclose(item_emb, ref_i, rtol=5e-3, atol=5e-3)
    assert jnp.allclose(reg_loss, ref_r, rtol=5e-3, atol=5e-3)
    print("KERNEL_OK")
</pallas_src>

<mosaic_0001>
module attributes {stable_mosaic.version = 11 : i64} {
  func.func @_model_kernel(%arg0: i32, %arg1: memref<2xf32, #tpu.memory_space<smem>>, %arg2: memref<3xf32, #tpu.memory_space<smem>>, %arg3: memref<3xf32, #tpu.memory_space<smem>>, %arg4: memref<16x16xf32, #tpu.memory_space<vmem>>, %arg5: memref<24x24xf32, #tpu.memory_space<vmem>>, %arg6: memref<40x40xf32, #tpu.memory_space<vmem>>, %arg7: memref<16x32xf32, #tpu.memory_space<vmem>>, %arg8: memref<24x32xf32, #tpu.memory_space<vmem>>, %arg9: memref<32x16xf32, #tpu.memory_space<vmem>>, %arg10: memref<32x16xf32, #tpu.memory_space<vmem>>, %arg11: memref<32x16xf32, #tpu.memory_space<vmem>>, %arg12: memref<32x16xf32, #tpu.memory_space<vmem>>, %arg13: memref<1x16xf32, #tpu.memory_space<vmem>>, %arg14: memref<1x16xf32, #tpu.memory_space<vmem>>, %arg15: memref<16x32xf32, #tpu.memory_space<vmem>>, %arg16: memref<16x32xf32, #tpu.memory_space<vmem>>, %arg17: memref<16x32xf32, #tpu.memory_space<vmem>>, %arg18: memref<16x32xf32, #tpu.memory_space<vmem>>, %arg19: memref<1x32xf32, #tpu.memory_space<vmem>>, %arg20: memref<1x32xf32, #tpu.memory_space<vmem>>, %arg21: memref<16x32xf32, #tpu.memory_space<vmem>>, %arg22: memref<24x32xf32, #tpu.memory_space<vmem>>, %arg23: memref<1x1xf32, #tpu.memory_space<vmem>>) attributes {dimension_semantics = [#tpu.dimension_semantics<arbitrary>], iteration_bounds = array<i64: 1>, scalar_prefetch = 0 : i64, scratch_operands = 0 : i64, tpu.core_type = #tpu.core_type<tc>, window_params = [{transform_indices = @transform_0, window_bounds = array<i64: 2>}, {transform_indices = @transform_1, window_bounds = array<i64: 3>}, {transform_indices = @transform_2, window_bounds = array<i64: 3>}, {pipeline_mode = #tpu.pipeline_mode<synchronous>, transform_indices = @transform_3, window_bounds = array<i64: 16, 16>}, {pipeline_mode = #tpu.pipeline_mode<synchronous>, transform_indices = @transform_4, window_bounds = array<i64: 24, 24>}, {pipeline_mode = #tpu.pipeline_mode<synchronous>, transform_indices = @transform_5, window_bounds = array<i64: 40, 40>}, {pipeline_mode = #tpu.pipeline_mode<synchronous>, transform_indices = @transform_6, window_bounds = array<i64: 16, 32>}, {pipeline_mode = #tpu.pipeline_mode<synchronous>, transform_indices = @transform_7, window_bounds = array<i64: 24, 32>}, {pipeline_mode = #tpu.pipeline_mode<synchronous>, transform_indices = @transform_8, window_bounds = array<i64: 32, 16>}, {pipeline_mode = #tpu.pipeline_mode<synchronous>, transform_indices = @transform_9, window_bounds = array<i64: 32, 16>}, {pipeline_mode = #tpu.pipeline_mode<synchronous>, transform_indices = @transform_10, window_bounds = array<i64: 32, 16>}, {pipeline_mode = #tpu.pipeline_mode<synchronous>, transform_indices = @transform_11, window_bounds = array<i64: 32, 16>}, {pipeline_mode = #tpu.pipeline_mode<synchronous>, transform_indices = @transform_12, window_bounds = array<i64: 1, 16>}, {pipeline_mode = #tpu.pipeline_mode<synchronous>, transform_indices = @transform_13, window_bounds = array<i64: 1, 16>}, {pipeline_mode = #tpu.pipeline_mode<synchronous>, transform_indices = @transform_14, window_bounds = array<i64: 16, 32>}, {pipeline_mode = #tpu.pipeline_mode<synchronous>, transform_indices = @transform_15, window_bounds = array<i64: 16, 32>}, {pipeline_mode = #tpu.pipeline_mode<synchronous>, transform_indices = @transform_16, window_bounds = array<i64: 16, 32>}, {pipeline_mode = #tpu.pipeline_mode<synchronous>, transform_indices = @transform_17, window_bounds = array<i64: 16, 32>}, {pipeline_mode = #tpu.pipeline_mode<synchronous>, transform_indices = @transform_18, window_bounds = array<i64: 1, 32>}, {pipeline_mode = #tpu.pipeline_mode<synchronous>, transform_indices = @transform_19, window_bounds = array<i64: 1, 32>}, {pipeline_mode = #tpu.pipeline_mode<synchronous>, transform_indices = @transform_20, window_bounds = array<i64: 16, 32>}, {pipeline_mode = #tpu.pipeline_mode<synchronous>, transform_indices = @transform_21, window_bounds = array<i64: 24, 32>}, {pipeline_mode = #tpu.pipeline_mode<synchronous>, transform_indices = @transform_22, window_bounds = array<i64: 1, 1>}]} {
    %c0 = arith.constant 0 : index
    %c0_0 = arith.constant 0 : index
    %0 = vector.load %arg4[%c0, %c0_0] : memref<16x16xf32, #tpu.memory_space<vmem>>, vector<16x16xf32>
    %c0_1 = arith.constant 0 : index
    %c0_2 = arith.constant 0 : index
    %1 = vector.load %arg5[%c0_1, %c0_2] : memref<24x24xf32, #tpu.memory_space<vmem>>, vector<24x24xf32>
    %c0_3 = arith.constant 0 : index
    %c0_4 = arith.constant 0 : index
    %2 = vector.load %arg6[%c0_3, %c0_4] : memref<40x40xf32, #tpu.memory_space<vmem>>, vector<40x40xf32>
    %cst = arith.constant dense<0.000000e+00> : vector<16xf32>
    %3 = vector.multi_reduction <add>, %0, %cst [1] : vector<16x16xf32> to vector<16xf32>
    %4 = vector.shape_cast %3 : vector<16xf32> to vector<16x1xf32>
    %cst_5 = arith.constant 0.000000e+00 : f32
    %5 = vector.broadcast %cst_5 : f32 to vector<16x1xf32>
    %6 = arith.cmpf ogt, %4, %5 : vector<16x1xf32>
    %cst_6 = arith.constant 1.000000e+00 : f32
    %7 = vector.broadcast %cst_6 : f32 to vector<16x1xf32>
    %8 = arith.select %6, %4, %7 : vector<16x1xi1>, vector<16x1xf32>
    %cst_7 = arith.constant 0.000000e+00 : f32
    %9 = vector.broadcast %cst_7 : f32 to vector<16x1xf32>
    %10 = arith.cmpf ogt, %4, %9 : vector<16x1xf32>
    %11 = math.rsqrt %8 : vector<16x1xf32>
    %cst_8 = arith.constant 0.000000e+00 : f32
    %12 = vector.broadcast %cst_8 : f32 to vector<16x1xf32>
    %13 = arith.select %10, %11, %12 : vector<16x1xi1>, vector<16x1xf32>
    %cst_9 = arith.constant dense<0.000000e+00> : vector<24xf32>
    %14 = vector.multi_reduction <add>, %1, %cst_9 [1] : vector<24x24xf32> to vector<24xf32>
    %15 = vector.shape_cast %14 : vector<24xf32> to vector<24x1xf32>
    %cst_10 = arith.constant 0.000000e+00 : f32
    %16 = vector.broadcast %cst_10 : f32 to vector<24x1xf32>
    %17 = arith.cmpf ogt, %15, %16 : vector<24x1xf32>
    %cst_11 = arith.constant 1.000000e+00 : f32
    %18 = vector.broadcast %cst_11 : f32 to vector<24x1xf32>
    %19 = arith.select %17, %15, %18 : vector<24x1xi1>, vector<24x1xf32>
    %cst_12 = arith.constant 0.000000e+00 : f32
    %20 = vector.broadcast %cst_12 : f32 to vector<24x1xf32>
    %21 = arith.cmpf ogt, %15, %20 : vector<24x1xf32>
    %22 = math.rsqrt %19 : vector<24x1xf32>
    %cst_13 = arith.constant 0.000000e+00 : f32
    %23 = vector.broadcast %cst_13 : f32 to vector<24x1xf32>
    %24 = arith.select %21, %22, %23 : vector<24x1xi1>, vector<24x1xf32>
    %cst_14 = arith.constant dense<0.000000e+00> : vector<40xf32>
    %25 = vector.multi_reduction <add>, %2, %cst_14 [1] : vector<40x40xf32> to vector<40xf32>
    %26 = vector.shape_cast %25 : vector<40xf32> to vector<40x1xf32>
    %cst_15 = arith.constant 0.000000e+00 : f32
    %27 = vector.broadcast %cst_15 : f32 to vector<40x1xf32>
    %28 = arith.cmpf ogt, %26, %27 : vector<40x1xf32>
    %cst_16 = arith.constant 1.000000e+00 : f32
    %29 = vector.broadcast %cst_16 : f32 to vector<40x1xf32>
    %30 = arith.select %28, %26, %29 : vector<40x1xi1>, vector<40x1xf32>
    %cst_17 = arith.constant 0.000000e+00 : f32
    %31 = vector.broadcast %cst_17 : f32 to vector<40x1xf32>
    %32 = arith.cmpf ogt, %26, %31 : vector<40x1xf32>
    %33 = math.rsqrt %30 : vector<40x1xf32>
    %cst_18 = arith.constant 0.000000e+00 : f32
    %34 = vector.broadcast %cst_18 : f32 to vector<40x1xf32>
    %35 = arith.select %32, %33, %34 : vector<40x1xi1>, vector<40x1xf32>
    %c0_19 = arith.constant 0 : index
    %c0_20 = arith.constant 0 : index
    %36 = vector.load %arg9[%c0_19, %c0_20] : memref<32x16xf32, #tpu.memory_space<vmem>>, vector<32x16xf32>
    %c0_21 = arith.constant 0 : index
    %c0_22 = arith.constant 0 : index
    %37 = vector.load %arg10[%c0_21, %c0_22] : memref<32x16xf32, #tpu.memory_space<vmem>>, vector<32x16xf32>
    %38 = tpu.concatenate %36, %37 in 1 : vector<32x16xf32>, vector<32x16xf32> -> vector<32x32xf32>
    %c0_23 = arith.constant 0 : index
    %c0_24 = arith.constant 0 : index
    %39 = vector.load %arg11[%c0_23, %c0_24] : memref<32x16xf32, #tpu.memory_space<vmem>>, vector<32x16xf32>
    %c0_25 = arith.constant 0 : index
    %c0_26 = arith.constant 0 : index
    %40 = vector.load %arg12[%c0_25, %c0_26] : memref<32x16xf32, #tpu.memory_space<vmem>>, vector<32x16xf32>
    %41 = tpu.concatenate %39, %40 in 1 : vector<32x16xf32>, vector<32x16xf32> -> vector<32x32xf32>
    %c0_27 = arith.constant 0 : index
    %c0_28 = arith.constant 0 : index
    %42 = vector.load %arg15[%c0_27, %c0_28] : memref<16x32xf32, #tpu.memory_space<vmem>>, vector<16x32xf32>
    %c0_29 = arith.constant 0 : index
    %c0_30 = arith.constant 0 : index
    %43 = vector.load %arg16[%c0_29, %c0_30] : memref<16x32xf32, #tpu.memory_space<vmem>>, vector<16x32xf32>
    %44 = tpu.concatenate %42, %43 in 1 : vector<16x32xf32>, vector<16x32xf32> -> vector<16x64xf32>
    %c0_31 = arith.constant 0 : index
    %c0_32 = arith.constant 0 : index
    %45 = vector.load %arg17[%c0_31, %c0_32] : memref<16x32xf32, #tpu.memory_space<vmem>>, vector<16x32xf32>
    %c0_33 = arith.constant 0 : index
    %c0_34 = arith.constant 0 : index
    %46 = vector.load %arg18[%c0_33, %c0_34] : memref<16x32xf32, #tpu.memory_space<vmem>>, vector<16x32xf32>
    %47 = tpu.concatenate %45, %46 in 1 : vector<16x32xf32>, vector<16x32xf32> -> vector<16x64xf32>
    %c0_35 = arith.constant 0 : index
    %c0_36 = arith.constant 0 : index
    %48 = vector.load %arg13[%c0_35, %c0_36] : memref<1x16xf32, #tpu.memory_space<vmem>>, vector<1x16xf32>
    %c0_37 = arith.constant 0 : index
    %c0_38 = arith.constant 0 : index
    %49 = vector.load %arg14[%c0_37, %c0_38] : memref<1x16xf32, #tpu.memory_space<vmem>>, vector<1x16xf32>
    %c0_39 = arith.constant 0 : index
    %c0_40 = arith.constant 0 : index
    %50 = vector.load %arg19[%c0_39, %c0_40] : memref<1x32xf32, #tpu.memory_space<vmem>>, vector<1x32xf32>
    %c0_41 = arith.constant 0 : index
    %c0_42 = arith.constant 0 : index
    %51 = vector.load %arg20[%c0_41, %c0_42] : memref<1x32xf32, #tpu.memory_space<vmem>>, vector<1x32xf32>
    %c0_43 = arith.constant 0 : index
    %c0_44 = arith.constant 0 : index
    %52 = vector.load %arg7[%c0_43, %c0_44] : memref<16x32xf32, #tpu.memory_space<vmem>>, vector<16x32xf32>
    %c0_45 = arith.constant 0 : index
    %c0_46 = arith.constant 0 : index
    %53 = vector.load %arg8[%c0_45, %c0_46] : memref<24x32xf32, #tpu.memory_space<vmem>>, vector<24x32xf32>
    %c0_47 = arith.constant 0 : index
    %54 = memref.load %arg1[%c0_47] : memref<2xf32, #tpu.memory_space<smem>>
    %c1 = arith.constant 1 : index
    %55 = memref.load %arg1[%c1] : memref<2xf32, #tpu.memory_space<smem>>
    %cst_48 = arith.constant dense<0.000000e+00> : vector<16x32xf32>
    %56 = tpu.matmul %52, %38, %cst_48 {dimension_numbers = #tpu.dot_dimension_numbers<[1], [0], [0], [1], [0, 0, 1, 1], [], []>} : vector<16x32xf32>, vector<32x32xf32>, vector<16x32xf32> -> vector<16x32xf32>
    %57 = vector.extract_strided_slice %56 {offsets = [0, 0], sizes = [16, 16], strides = [1, 1]} : vector<16x32xf32> to vector<16x16xf32>
    %58 = vector.broadcast %48 : vector<1x16xf32> to vector<16x16xf32>
    %59 = arith.addf %57, %58 : vector<16x16xf32>
    %cst_49 = arith.constant 0.000000e+00 : f32
    %60 = vector.broadcast %cst_49 : f32 to vector<16x16xf32>
    %61 = arith.cmpf oge, %59, %60 : vector<16x16xf32>
    %cst_50 = arith.constant 0.00999999977 : f32
    %62 = vector.broadcast %cst_50 : f32 to vector<16x16xf32>
    %63 = arith.mulf %62, %59 : vector<16x16xf32>
    %64 = arith.select %61, %59, %63 : vector<16x16xi1>, vector<16x16xf32>
    %65 = vector.extract_strided_slice %56 {offsets = [0, 16], sizes = [16, 16], strides = [1, 1]} : vector<16x32xf32> to vector<16x16xf32>
    %66 = arith.mulf %65, %64 : vector<16x16xf32>
    %cst_51 = arith.constant dense<0.000000e+00> : vector<24x32xf32>
    %67 = tpu.matmul %53, %41, %cst_51 {dimension_numbers = #tpu.dot_dimension_numbers<[1], [0], [0], [1], [0, 0, 1, 1], [], []>} : vector<24x32xf32>, vector<32x32xf32>, vector<24x32xf32> -> vector<24x32xf32>
    %68 = vector.extract_strided_slice %67 {offsets = [0, 0], sizes = [24, 16], strides = [1, 1]} : vector<24x32xf32> to vector<24x16xf32>
    %69 = vector.broadcast %49 : vector<1x16xf32> to vector<24x16xf32>
    %70 = arith.addf %68, %69 : vector<24x16xf32>
    %cst_52 = arith.constant 0.000000e+00 : f32
    %71 = vector.broadcast %cst_52 : f32 to vector<24x16xf32>
    %72 = arith.cmpf oge, %70, %71 : vector<24x16xf32>
    %cst_53 = arith.constant 0.00999999977 : f32
    %73 = vector.broadcast %cst_53 : f32 to vector<24x16xf32>
    %74 = arith.mulf %73, %70 : vector<24x16xf32>
    %75 = arith.select %72, %70, %74 : vector<24x16xi1>, vector<24x16xf32>
    %76 = vector.extract_strided_slice %67 {offsets = [0, 16], sizes = [24, 16], strides = [1, 1]} : vector<24x32xf32> to vector<24x16xf32>
    %77 = arith.mulf %76, %75 : vector<24x16xf32>
    %c0_54 = arith.constant 0 : index
    %78 = memref.load %arg2[%c0_54] : memref<3xf32, #tpu.memory_space<smem>>
    %79 = vector.broadcast %78 : f32 to vector<16x16xf32>
    %80 = arith.mulf %79, %66 : vector<16x16xf32>
    %81 = vector.broadcast %13 : vector<16x1xf32> to vector<16x16xf32>
    %82 = arith.mulf %81, %66 : vector<16x16xf32>
    %cst_55 = arith.constant dense<0.000000e+00> : vector<16x16xf32>
    %83 = tpu.matmul %0, %82, %cst_55 {dimension_numbers = #tpu.dot_dimension_numbers<[1], [0], [0], [1], [0, 0, 1, 1], [], []>} : vector<16x16xf32>, vector<16x16xf32>, vector<16x16xf32> -> vector<16x16xf32>
    %84 = vector.broadcast %13 : vector<16x1xf32> to vector<16x16xf32>
    %85 = arith.mulf %84, %83 : vector<16x16xf32>
    %c1_56 = arith.constant 1 : index
    %86 = memref.load %arg2[%c1_56] : memref<3xf32, #tpu.memory_space<smem>>
    %87 = vector.broadcast %86 : f32 to vector<16x16xf32>
    %88 = arith.mulf %87, %85 : vector<16x16xf32>
    %89 = arith.addf %80, %88 : vector<16x16xf32>
    %90 = vector.broadcast %13 : vector<16x1xf32> to vector<16x16xf32>
    %91 = arith.mulf %90, %85 : vector<16x16xf32>
    %cst_57 = arith.constant dense<0.000000e+00> : vector<16x16xf32>
    %92 = tpu.matmul %0, %91, %cst_57 {dimension_numbers = #tpu.dot_dimension_numbers<[1], [0], [0], [1], [0, 0, 1, 1], [], []>} : vector<16x16xf32>, vector<16x16xf32>, vector<16x16xf32> -> vector<16x16xf32>
    %93 = vector.broadcast %13 : vector<16x1xf32> to vector<16x16xf32>
    %94 = arith.mulf %93, %92 : vector<16x16xf32>
    %c2 = arith.constant 2 : index
    %95 = memref.load %arg2[%c2] : memref<3xf32, #tpu.memory_space<smem>>
    %96 = vector.broadcast %95 : f32 to vector<16x16xf32>
    %97 = arith.mulf %96, %94 : vector<16x16xf32>
    %98 = arith.addf %89, %97 : vector<16x16xf32>
    %c0_58 = arith.constant 0 : index
    %99 = memref.load %arg3[%c0_58] : memref<3xf32, #tpu.memory_space<smem>>
    %100 = vector.broadcast %99 : f32 to vector<24x16xf32>
    %101 = arith.mulf %100, %77 : vector<24x16xf32>
    %102 = vector.broadcast %24 : vector<24x1xf32> to vector<24x16xf32>
    %103 = arith.mulf %102, %77 : vector<24x16xf32>
    %cst_59 = arith.constant dense<0.000000e+00> : vector<24x16xf32>
    %104 = tpu.matmul %1, %103, %cst_59 {dimension_numbers = #tpu.dot_dimension_numbers<[1], [0], [0], [1], [0, 0, 1, 1], [], []>} : vector<24x24xf32>, vector<24x16xf32>, vector<24x16xf32> -> vector<24x16xf32>
    %105 = vector.broadcast %24 : vector<24x1xf32> to vector<24x16xf32>
    %106 = arith.mulf %105, %104 : vector<24x16xf32>
    %c1_60 = arith.constant 1 : index
    %107 = memref.load %arg3[%c1_60] : memref<3xf32, #tpu.memory_space<smem>>
    %108 = vector.broadcast %107 : f32 to vector<24x16xf32>
    %109 = arith.mulf %108, %106 : vector<24x16xf32>
    %110 = arith.addf %101, %109 : vector<24x16xf32>
    %111 = vector.broadcast %24 : vector<24x1xf32> to vector<24x16xf32>
    %112 = arith.mulf %111, %106 : vector<24x16xf32>
    %cst_61 = arith.constant dense<0.000000e+00> : vector<24x16xf32>
    %113 = tpu.matmul %1, %112, %cst_61 {dimension_numbers = #tpu.dot_dimension_numbers<[1], [0], [0], [1], [0, 0, 1, 1], [], []>} : vector<24x24xf32>, vector<24x16xf32>, vector<24x16xf32> -> vector<24x16xf32>
    %114 = vector.broadcast %24 : vector<24x1xf32> to vector<24x16xf32>
    %115 = arith.mulf %114, %113 : vector<24x16xf32>
    %c2_62 = arith.constant 2 : index
    %116 = memref.load %arg3[%c2_62] : memref<3xf32, #tpu.memory_space<smem>>
    %117 = vector.broadcast %116 : f32 to vector<24x16xf32>
    %118 = arith.mulf %117, %115 : vector<24x16xf32>
    %119 = arith.addf %110, %118 : vector<24x16xf32>
    %120 = tpu.concatenate %52, %53 in 0 : vector<16x32xf32>, vector<24x32xf32> -> vector<40x32xf32>
    %121 = vector.broadcast %35 : vector<40x1xf32> to vector<40x32xf32>
    %122 = arith.mulf %121, %120 : vector<40x32xf32>
    %cst_63 = arith.constant dense<0.000000e+00> : vector<40x32xf32>
    %123 = tpu.matmul %2, %122, %cst_63 {dimension_numbers = #tpu.dot_dimension_numbers<[1], [0], [0], [1], [0, 0, 1, 1], [], []>} : vector<40x40xf32>, vector<40x32xf32>, vector<40x32xf32> -> vector<40x32xf32>
    %124 = vector.broadcast %35 : vector<40x1xf32> to vector<40x32xf32>
    %125 = arith.mulf %124, %123 : vector<40x32xf32>
    %cst_64 = arith.constant dense<0.000000e+00> : vector<16x64xf32>
    %126 = tpu.matmul %98, %44, %cst_64 {dimension_numbers = #tpu.dot_dimension_numbers<[1], [0], [0], [1], [0, 0, 1, 1], [], []>} : vector<16x16xf32>, vector<16x64xf32>, vector<16x64xf32> -> vector<16x64xf32>
    %127 = vector.extract_strided_slice %126 {offsets = [0, 0], sizes = [16, 32], strides = [1, 1]} : vector<16x64xf32> to vector<16x32xf32>
    %128 = vector.broadcast %50 : vector<1x32xf32> to vector<16x32xf32>
    %129 = arith.addf %127, %128 : vector<16x32xf32>
    %cst_65 = arith.constant 0.000000e+00 : f32
    %130 = vector.broadcast %cst_65 : f32 to vector<16x32xf32>
    %131 = arith.cmpf oge, %129, %130 : vector<16x32xf32>
    %cst_66 = arith.constant 0.00999999977 : f32
    %132 = vector.broadcast %cst_66 : f32 to vector<16x32xf32>
    %133 = arith.mulf %132, %129 : vector<16x32xf32>
    %134 = arith.select %131, %129, %133 : vector<16x32xi1>, vector<16x32xf32>
    %135 = vector.extract_strided_slice %126 {offsets = [0, 32], sizes = [16, 32], strides = [1, 1]} : vector<16x64xf32> to vector<16x32xf32>
    %136 = arith.mulf %135, %134 : vector<16x32xf32>
    %cst_67 = arith.constant dense<0.000000e+00> : vector<24x64xf32>
    %137 = tpu.matmul %119, %47, %cst_67 {dimension_numbers = #tpu.dot_dimension_numbers<[1], [0], [0], [1], [0, 0, 1, 1], [], []>} : vector<24x16xf32>, vector<16x64xf32>, vector<24x64xf32> -> vector<24x64xf32>
    %138 = vector.extract_strided_slice %137 {offsets = [0, 0], sizes = [24, 32], strides = [1, 1]} : vector<24x64xf32> to vector<24x32xf32>
    %139 = vector.broadcast %51 : vector<1x32xf32> to vector<24x32xf32>
    %140 = arith.addf %138, %139 : vector<24x32xf32>
    %cst_68 = arith.constant 0.000000e+00 : f32
    %141 = vector.broadcast %cst_68 : f32 to vector<24x32xf32>
    %142 = arith.cmpf oge, %140, %141 : vector<24x32xf32>
    %cst_69 = arith.constant 0.00999999977 : f32
    %143 = vector.broadcast %cst_69 : f32 to vector<24x32xf32>
    %144 = arith.mulf %143, %140 : vector<24x32xf32>
    %145 = arith.select %142, %140, %144 : vector<24x32xi1>, vector<24x32xf32>
    %146 = vector.extract_strided_slice %137 {offsets = [0, 32], sizes = [24, 32], strides = [1, 1]} : vector<24x64xf32> to vector<24x32xf32>
    %147 = arith.mulf %146, %145 : vector<24x32xf32>
    %148 = vector.extract_strided_slice %125 {offsets = [0, 0], sizes = [16, 32], strides = [1, 1]} : vector<40x32xf32> to vector<16x32xf32>
    %149 = vector.broadcast %54 : f32 to vector<16x32xf32>
    %150 = arith.mulf %149, %148 : vector<16x32xf32>
    %cst_70 = arith.constant 1.000000e+00 : f32
    %151 = arith.subf %cst_70, %54 : f32
    %152 = vector.broadcast %151 : f32 to vector<16x32xf32>
    %153 = arith.mulf %152, %136 : vector<16x32xf32>
    %154 = arith.addf %150, %153 : vector<16x32xf32>
    %155 = vector.extract_strided_slice %125 {offsets = [16, 0], sizes = [24, 32], strides = [1, 1]} : vector<40x32xf32> to vector<24x32xf32>
    %156 = vector.broadcast %55 : f32 to vector<24x32xf32>
    %157 = arith.mulf %156, %155 : vector<24x32xf32>
    %cst_71 = arith.constant 1.000000e+00 : f32
    %158 = arith.subf %cst_71, %55 : f32
    %159 = vector.broadcast %158 : f32 to vector<24x32xf32>
    %160 = arith.mulf %159, %147 : vector<24x32xf32>
    %161 = arith.addf %157, %160 : vector<24x32xf32>
    %cst_72 = arith.constant dense<0.000000e+00> : vector<16x32xf32>
    %162 = tpu.matmul %154, %38, %cst_72 {dimension_numbers = #tpu.dot_dimension_numbers<[1], [0], [0], [1], [0, 0, 1, 1], [], []>} : vector<16x32xf32>, vector<32x32xf32>, vector<16x32xf32> -> vector<16x32xf32>
    %163 = vector.extract_strided_slice %162 {offsets = [0, 0], sizes = [16, 16], strides = [1, 1]} : vector<16x32xf32> to vector<16x16xf32>
    %164 = vector.broadcast %48 : vector<1x16xf32> to vector<16x16xf32>
    %165 = arith.addf %163, %164 : vector<16x16xf32>
    %cst_73 = arith.constant 0.000000e+00 : f32
    %166 = vector.broadcast %cst_73 : f32 to vector<16x16xf32>
    %167 = arith.cmpf oge, %165, %166 : vector<16x16xf32>
    %cst_74 = arith.constant 0.00999999977 : f32
    %168 = vector.broadcast %cst_74 : f32 to vector<16x16xf32>
    %169 = arith.mulf %168, %165 : vector<16x16xf32>
    %170 = arith.select %167, %165, %169 : vector<16x16xi1>, vector<16x16xf32>
    %171 = vector.extract_strided_slice %162 {offsets = [0, 16], sizes = [16, 16], strides = [1, 1]} : vector<16x32xf32> to vector<16x16xf32>
    %172 = arith.mulf %171, %170 : vector<16x16xf32>
    %cst_75 = arith.constant dense<0.000000e+00> : vector<24x32xf32>
    %173 = tpu.matmul %161, %41, %cst_75 {dimension_numbers = #tpu.dot_dimension_numbers<[1], [0], [0], [1], [0, 0, 1, 1], [], []>} : vector<24x32xf32>, vector<32x32xf32>, vector<24x32xf32> -> vector<24x32xf32>
    %174 = vector.extract_strided_slice %173 {offsets = [0, 0], sizes = [24, 16], strides = [1, 1]} : vector<24x32xf32> to vector<24x16xf32>
    %175 = vector.broadcast %49 : vector<1x16xf32> to vector<24x16xf32>
    %176 = arith.addf %174, %175 : vector<24x16xf32>
    %cst_76 = arith.constant 0.000000e+00 : f32
    %177 = vector.broadcast %cst_76 : f32 to vector<24x16xf32>
    %178 = arith.cmpf oge, %176, %177 : vector<24x16xf32>
    %cst_77 = arith.constant 0.00999999977 : f32
    %179 = vector.broadcast %cst_77 : f32 to vector<24x16xf32>
    %180 = arith.mulf %179, %176 : vector<24x16xf32>
    %181 = arith.select %178, %176, %180 : vector<24x16xi1>, vector<24x16xf32>
    %182 = vector.extract_strided_slice %173 {offsets = [0, 16], sizes = [24, 16], strides = [1, 1]} : vector<24x32xf32> to vector<24x16xf32>
    %183 = arith.mulf %182, %181 : vector<24x16xf32>
    %184 = arith.mulf %154, %154 : vector<16x32xf32>
    %cst_78 = arith.constant dense<0.000000e+00> : vector<16xf32>
    %185 = vector.multi_reduction <add>, %184, %cst_78 [1] : vector<16x32xf32> to vector<16xf32>
    %186 = vector.shape_cast %185 : vector<16xf32> to vector<16x1xf32>
    %187 = math.sqrt %186 : vector<16x1xf32>
    %cst_79 = arith.constant 9.99999996E-13 : f32
    %188 = vector.broadcast %cst_79 : f32 to vector<16x1xf32>
    %189 = arith.maximumf %187, %188 : vector<16x1xf32>
    %190 = tpu.reciprocal %189 : vector<16x1xf32> -> vector<16x1xf32>
    %191 = vector.broadcast %190 : vector<16x1xf32> to vector<16x32xf32>
    %192 = arith.mulf %154, %191 : vector<16x32xf32>
    %193 = arith.addf %52, %192 : vector<16x32xf32>
    %194 = arith.mulf %161, %161 : vector<24x32xf32>
    %cst_80 = arith.constant dense<0.000000e+00> : vector<24xf32>
    %195 = vector.multi_reduction <add>, %194, %cst_80 [1] : vector<24x32xf32> to vector<24xf32>
    %196 = vector.shape_cast %195 : vector<24xf32> to vector<24x1xf32>
    %197 = math.sqrt %196 : vector<24x1xf32>
    %cst_81 = arith.constant 9.99999996E-13 : f32
    %198 = vector.broadcast %cst_81 : f32 to vector<24x1xf32>
    %199 = arith.maximumf %197, %198 : vector<24x1xf32>
    %200 = tpu.reciprocal %199 : vector<24x1xf32> -> vector<24x1xf32>
    %201 = vector.broadcast %200 : vector<24x1xf32> to vector<24x32xf32>
    %202 = arith.mulf %161, %201 : vector<24x32xf32>
    %203 = arith.addf %53, %202 : vector<24x32xf32>
    %c0_82 = arith.constant 0 : index
    %204 = memref.load %arg2[%c0_82] : memref<3xf32, #tpu.memory_space<smem>>
    %205 = vector.broadcast %204 : f32 to vector<16x16xf32>
    %206 = arith.mulf %205, %172 : vector<16x16xf32>
    %207 = vector.broadcast %13 : vector<16x1xf32> to vector<16x16xf32>
    %208 = arith.mulf %207, %172 : vector<16x16xf32>
    %cst_83 = arith.constant dense<0.000000e+00> : vector<16x16xf32>
    %209 = tpu.matmul %0, %208, %cst_83 {dimension_numbers = #tpu.dot_dimension_numbers<[1], [0], [0], [1], [0, 0, 1, 1], [], []>} : vector<16x16xf32>, vector<16x16xf32>, vector<16x16xf32> -> vector<16x16xf32>
    %210 = vector.broadcast %13 : vector<16x1xf32> to vector<16x16xf32>
    %211 = arith.mulf %210, %209 : vector<16x16xf32>
    %c1_84 = arith.constant 1 : index
    %212 = memref.load %arg2[%c1_84] : memref<3xf32, #tpu.memory_space<smem>>
    %213 = vector.broadcast %212 : f32 to vector<16x16xf32>
    %214 = arith.mulf %213, %211 : vector<16x16xf32>
    %215 = arith.addf %206, %214 : vector<16x16xf32>
    %216 = vector.broadcast %13 : vector<16x1xf32> to vector<16x16xf32>
    %217 = arith.mulf %216, %211 : vector<16x16xf32>
    %cst_85 = arith.constant dense<0.000000e+00> : vector<16x16xf32>
    %218 = tpu.matmul %0, %217, %cst_85 {dimension_numbers = #tpu.dot_dimension_numbers<[1], [0], [0], [1], [0, 0, 1, 1], [], []>} : vector<16x16xf32>, vector<16x16xf32>, vector<16x16xf32> -> vector<16x16xf32>
    %219 = vector.broadcast %13 : vector<16x1xf32> to vector<16x16xf32>
    %220 = arith.mulf %219, %218 : vector<16x16xf32>
    %c2_86 = arith.constant 2 : index
    %221 = memref.load %arg2[%c2_86] : memref<3xf32, #tpu.memory_space<smem>>
    %222 = vector.broadcast %221 : f32 to vector<16x16xf32>
    %223 = arith.mulf %222, %220 : vector<16x16xf32>
    %224 = arith.addf %215, %223 : vector<16x16xf32>
    %c0_87 = arith.constant 0 : index
    %225 = memref.load %arg3[%c0_87] : memref<3xf32, #tpu.memory_space<smem>>
    %226 = vector.broadcast %225 : f32 to vector<24x16xf32>
    %227 = arith.mulf %226, %183 : vector<24x16xf32>
    %228 = vector.broadcast %24 : vector<24x1xf32> to vector<24x16xf32>
    %229 = arith.mulf %228, %183 : vector<24x16xf32>
    %cst_88 = arith.constant dense<0.000000e+00> : vector<24x16xf32>
    %230 = tpu.matmul %1, %229, %cst_88 {dimension_numbers = #tpu.dot_dimension_numbers<[1], [0], [0], [1], [0, 0, 1, 1], [], []>} : vector<24x24xf32>, vector<24x16xf32>, vector<24x16xf32> -> vector<24x16xf32>
    %231 = vector.broadcast %24 : vector<24x1xf32> to vector<24x16xf32>
    %232 = arith.mulf %231, %230 : vector<24x16xf32>
    %c1_89 = arith.constant 1 : index
    %233 = memref.load %arg3[%c1_89] : memref<3xf32, #tpu.memory_space<smem>>
    %234 = vector.broadcast %233 : f32 to vector<24x16xf32>
    %235 = arith.mulf %234, %232 : vector<24x16xf32>
    %236 = arith.addf %227, %235 : vector<24x16xf32>
    %237 = vector.broadcast %24 : vector<24x1xf32> to vector<24x16xf32>
    %238 = arith.mulf %237, %232 : vector<24x16xf32>
    %cst_90 = arith.constant dense<0.000000e+00> : vector<24x16xf32>
    %239 = tpu.matmul %1, %238, %cst_90 {dimension_numbers = #tpu.dot_dimension_numbers<[1], [0], [0], [1], [0, 0, 1, 1], [], []>} : vector<24x24xf32>, vector<24x16xf32>, vector<24x16xf32> -> vector<24x16xf32>
    %240 = vector.broadcast %24 : vector<24x1xf32> to vector<24x16xf32>
    %241 = arith.mulf %240, %239 : vector<24x16xf32>
    %c2_91 = arith.constant 2 : index
    %242 = memref.load %arg3[%c2_91] : memref<3xf32, #tpu.memory_space<smem>>
    %243 = vector.broadcast %242 : f32 to vector<24x16xf32>
    %244 = arith.mulf %243, %241 : vector<24x16xf32>
    %245 = arith.addf %236, %244 : vector<24x16xf32>
    %246 = tpu.concatenate %154, %161 in 0 : vector<16x32xf32>, vector<24x32xf32> -> vector<40x32xf32>
    %247 = vector.broadcast %35 : vector<40x1xf32> to vector<40x32xf32>
    %248 = arith.mulf %247, %246 : vector<40x32xf32>
    %cst_92 = arith.constant dense<0.000000e+00> : vector<40x32xf32>
    %249 = tpu.matmul %2, %248, %cst_92 {dimension_numbers = #tpu.dot_dimension_numbers<[1], [0], [0], [1], [0, 0, 1, 1], [], []>} : vector<40x40xf32>, vector<40x32xf32>, vector<40x32xf32> -> vector<40x32xf32>
    %250 = vector.broadcast %35 : vector<40x1xf32> to vector<40x32xf32>
    %251 = arith.mulf %250, %249 : vector<40x32xf32>
    %cst_93 = arith.constant dense<0.000000e+00> : vector<16x64xf32>
    %252 = tpu.matmul %224, %44, %cst_93 {dimension_numbers = #tpu.dot_dimension_numbers<[1], [0], [0], [1], [0, 0, 1, 1], [], []>} : vector<16x16xf32>, vector<16x64xf32>, vector<16x64xf32> -> vector<16x64xf32>
    %253 = vector.extract_strided_slice %252 {offsets = [0, 0], sizes = [16, 32], strides = [1, 1]} : vector<16x64xf32> to vector<16x32xf32>
    %254 = vector.broadcast %50 : vector<1x32xf32> to vector<16x32xf32>
    %255 = arith.addf %253, %254 : vector<16x32xf32>
    %cst_94 = arith.constant 0.000000e+00 : f32
    %256 = vector.broadcast %cst_94 : f32 to vector<16x32xf32>
    %257 = arith.cmpf oge, %255, %256 : vector<16x32xf32>
    %cst_95 = arith.constant 0.00999999977 : f32
    %258 = vector.broadcast %cst_95 : f32 to vector<16x32xf32>
    %259 = arith.mulf %258, %255 : vector<16x32xf32>
    %260 = arith.select %257, %255, %259 : vector<16x32xi1>, vector<16x32xf32>
    %261 = vector.extract_strided_slice %252 {offsets = [0, 32], sizes = [16, 32], strides = [1, 1]} : vector<16x64xf32> to vector<16x32xf32>
    %262 = arith.mulf %261, %260 : vector<16x32xf32>
    %cst_96 = arith.constant dense<0.000000e+00> : vector<24x64xf32>
    %263 = tpu.matmul %245, %47, %cst_96 {dimension_numbers = #tpu.dot_dimension_numbers<[1], [0], [0], [1], [0, 0, 1, 1], [], []>} : vector<24x16xf32>, vector<16x64xf32>, vector<24x64xf32> -> vector<24x64xf32>
    %264 = vector.extract_strided_slice %263 {offsets = [0, 0], sizes = [24, 32], strides = [1, 1]} : vector<24x64xf32> to vector<24x32xf32>
    %265 = vector.broadcast %51 : vector<1x32xf32> to vector<24x32xf32>
    %266 = arith.addf %264, %265 : vector<24x32xf32>
    %cst_97 = arith.constant 0.000000e+00 : f32
    %267 = vector.broadcast %cst_97 : f32 to vector<24x32xf32>
    %268 = arith.cmpf oge, %266, %267 : vector<24x32xf32>
    %cst_98 = arith.constant 0.00999999977 : f32
    %269 = vector.broadcast %cst_98 : f32 to vector<24x32xf32>
    %270 = arith.mulf %269, %266 : vector<24x32xf32>
    %271 = arith.select %268, %266, %270 : vector<24x32xi1>, vector<24x32xf32>
    %272 = vector.extract_strided_slice %263 {offsets = [0, 32], sizes = [24, 32], strides = [1, 1]} : vector<24x64xf32> to vector<24x32xf32>
    %273 = arith.mulf %272, %271 : vector<24x32xf32>
    %274 = vector.extract_strided_slice %251 {offsets = [0, 0], sizes = [16, 32], strides = [1, 1]} : vector<40x32xf32> to vector<16x32xf32>
    %275 = vector.broadcast %54 : f32 to vector<16x32xf32>
    %276 = arith.mulf %275, %274 : vector<16x32xf32>
    %cst_99 = arith.constant 1.000000e+00 : f32
    %277 = arith.subf %cst_99, %54 : f32
    %278 = vector.broadcast %277 : f32 to vector<16x32xf32>
    %279 = arith.mulf %278, %262 : vector<16x32xf32>
    %280 = arith.addf %276, %279 : vector<16x32xf32>
    %281 = vector.extract_strided_slice %251 {offsets = [16, 0], sizes = [24, 32], strides = [1, 1]} : vector<40x32xf32> to vector<24x32xf32>
    %282 = vector.broadcast %55 : f32 to vector<24x32xf32>
    %283 = arith.mulf %282, %281 : vector<24x32xf32>
    %cst_100 = arith.constant 1.000000e+00 : f32
    %284 = arith.subf %cst_100, %55 : f32
    %285 = vector.broadcast %284 : f32 to vector<24x32xf32>
    %286 = arith.mulf %285, %273 : vector<24x32xf32>
    %287 = arith.addf %283, %286 : vector<24x32xf32>
    %288 = arith.mulf %280, %280 : vector<16x32xf32>
    %cst_101 = arith.constant dense<0.000000e+00> : vector<16xf32>
    %289 = vector.multi_reduction <add>, %288, %cst_101 [1] : vector<16x32xf32> to vector<16xf32>
    %290 = vector.shape_cast %289 : vector<16xf32> to vector<16x1xf32>
    %291 = math.sqrt %290 : vector<16x1xf32>
    %cst_102 = arith.constant 9.99999996E-13 : f32
    %292 = vector.broadcast %cst_102 : f32 to vector<16x1xf32>
    %293 = arith.maximumf %291, %292 : vector<16x1xf32>
    %294 = tpu.reciprocal %293 : vector<16x1xf32> -> vector<16x1xf32>
    %295 = vector.broadcast %294 : vector<16x1xf32> to vector<16x32xf32>
    %296 = arith.mulf %280, %295 : vector<16x32xf32>
    %297 = arith.addf %193, %296 : vector<16x32xf32>
    %298 = arith.mulf %287, %287 : vector<24x32xf32>
    %cst_103 = arith.constant dense<0.000000e+00> : vector<24xf32>
    %299 = vector.multi_reduction <add>, %298, %cst_103 [1] : vector<24x32xf32> to vector<24xf32>
    %300 = vector.shape_cast %299 : vector<24xf32> to vector<24x1xf32>
    %301 = math.sqrt %300 : vector<24x1xf32>
    %cst_104 = arith.constant 9.99999996E-13 : f32
    %302 = vector.broadcast %cst_104 : f32 to vector<24x1xf32>
    %303 = arith.maximumf %301, %302 : vector<24x1xf32>
    %304 = tpu.reciprocal %303 : vector<24x1xf32> -> vector<24x1xf32>
    %305 = vector.broadcast %304 : vector<24x1xf32> to vector<24x32xf32>
    %306 = arith.mulf %287, %305 : vector<24x32xf32>
    %307 = arith.addf %203, %306 : vector<24x32xf32>
    %cst_105 = arith.constant 0.333333343 : f32
    %308 = vector.broadcast %cst_105 : f32 to vector<16x32xf32>
    %309 = arith.mulf %297, %308 : vector<16x32xf32>
    %c0_106 = arith.constant 0 : index
    %c0_107 = arith.constant 0 : index
    %310 = vector.load %arg21[%c0_106, %c0_107] : memref<16x32xf32, #tpu.memory_space<vmem>>, vector<16x32xf32>
    tpu.vector_store %arg21[%c0_106, %c0_107], %309 {strides = array<i32>} : memref<16x32xf32, #tpu.memory_space<vmem>>, vector<16x32xf32>,
    %cst_108 = arith.constant 0.333333343 : f32
    %311 = vector.broadcast %cst_108 : f32 to vector<24x32xf32>
    %312 = arith.mulf %307, %311 : vector<24x32xf32>
    %c0_109 = arith.constant 0 : index
    %c0_110 = arith.constant 0 : index
    %313 = vector.load %arg22[%c0_109, %c0_110] : memref<24x32xf32, #tpu.memory_space<vmem>>, vector<24x32xf32>
    tpu.vector_store %arg22[%c0_109, %c0_110], %312 {strides = array<i32>} : memref<24x32xf32, #tpu.memory_space<vmem>>, vector<24x32xf32>,
    %314 = arith.mulf %38, %38 : vector<32x32xf32>
    %cst_111 = arith.constant dense<0.000000e+00> : vector<32xf32>
    %315 = vector.multi_reduction <add>, %314, %cst_111 [1] : vector<32x32xf32> to vector<32xf32>
    %316 = vector.shape_cast %315 : vector<32xf32> to vector<32x1xf32>
    %cst_112 = arith.constant dense<0.000000e+00> : vector<1xf32>
    %317 = vector.multi_reduction <add>, %316, %cst_112 [0] : vector<32x1xf32> to vector<1xf32>
    %318 = vector.shape_cast %317 : vector<1xf32> to vector<1x1xf32>
    %319 = arith.mulf %41, %41 : vector<32x32xf32>
    %cst_113 = arith.constant dense<0.000000e+00> : vector<32xf32>
    %320 = vector.multi_reduction <add>, %319, %cst_113 [1] : vector<32x32xf32> to vector<32xf32>
    %321 = vector.shape_cast %320 : vector<32xf32> to vector<32x1xf32>
    %cst_114 = arith.constant dense<0.000000e+00> : vector<1xf32>
    %322 = vector.multi_reduction <add>, %321, %cst_114 [0] : vector<32x1xf32> to vector<1xf32>
    %323 = vector.shape_cast %322 : vector<1xf32> to vector<1x1xf32>
    %324 = arith.addf %318, %323 : vector<1x1xf32>
    %325 = arith.mulf %44, %44 : vector<16x64xf32>
    %cst_115 = arith.constant dense<0.000000e+00> : vector<16xf32>
    %326 = vector.multi_reduction <add>, %325, %cst_115 [1] : vector<16x64xf32> to vector<16xf32>
    %327 = vector.shape_cast %326 : vector<16xf32> to vector<16x1xf32>
    %cst_116 = arith.constant dense<0.000000e+00> : vector<1xf32>
    %328 = vector.multi_reduction <add>, %327, %cst_116 [0] : vector<16x1xf32> to vector<1xf32>
    %329 = vector.shape_cast %328 : vector<1xf32> to vector<1x1xf32>
    %330 = arith.addf %324, %329 : vector<1x1xf32>
    %331 = arith.mulf %47, %47 : vector<16x64xf32>
    %cst_117 = arith.constant dense<0.000000e+00> : vector<16xf32>
    %332 = vector.multi_reduction <add>, %331, %cst_117 [1] : vector<16x64xf32> to vector<16xf32>
    %333 = vector.shape_cast %332 : vector<16xf32> to vector<16x1xf32>
    %cst_118 = arith.constant dense<0.000000e+00> : vector<1xf32>
    %334 = vector.multi_reduction <add>, %333, %cst_118 [0] : vector<16x1xf32> to vector<1xf32>
    %335 = vector.shape_cast %334 : vector<1xf32> to vector<1x1xf32>
    %336 = arith.addf %330, %335 : vector<1x1xf32>
    %cst_119 = arith.constant 5.000000e-01 : f32
    %337 = vector.broadcast %cst_119 : f32 to vector<1x1xf32>
    %338 = arith.mulf %337, %336 : vector<1x1xf32>
    %c0_120 = arith.constant 0 : index
    %c0_121 = arith.constant 0 : index
    %339 = vector.load %arg23[%c0_120, %c0_121] : memref<1x1xf32, #tpu.memory_space<vmem>>, vector<1x1xf32>
    tpu.vector_store %arg23[%c0_120, %c0_121], %338 {strides = array<i32>} : memref<1x1xf32, #tpu.memory_space<vmem>>, vector<1x1xf32>,
    return
  }
  func.func @transform_0(%arg0: i32) -> i32 {
    %c0_i32 = arith.constant 0 : i32
    %c0_i32_0 = arith.constant 0 : i32
    return %c0_i32 : i32
  }
  func.func @transform_1(%arg0: i32) -> i32 {
    %c0_i32 = arith.constant 0 : i32
    %c0_i32_0 = arith.constant 0 : i32
    return %c0_i32 : i32
  }
  func.func @transform_2(%arg0: i32) -> i32 {
    %c0_i32 = arith.constant 0 : i32
    %c0_i32_0 = arith.constant 0 : i32
    return %c0_i32 : i32
  }
  func.func @transform_3(%arg0: i32) -> (i32, i32) {
    %c0_i32 = arith.constant 0 : i32
    %c0_i32_0 = arith.constant 0 : i32
    %c0_i32_1 = arith.constant 0 : i32
    return %c0_i32, %c0_i32_0 : i32, i32
  }
  func.func @transform_4(%arg0: i32) -> (i32, i32) {
    %c0_i32 = arith.constant 0 : i32
    %c0_i32_0 = arith.constant 0 : i32
    %c0_i32_1 = arith.constant 0 : i32
    return %c0_i32, %c0_i32_0 : i32, i32
  }
  func.func @transform_5(%arg0: i32) -> (i32, i32) {
    %c0_i32 = arith.constant 0 : i32
    %c0_i32_0 = arith.constant 0 : i32
    %c0_i32_1 = arith.constant 0 : i32
    return %c0_i32, %c0_i32_0 : i32, i32
  }
  func.func @transform_6(%arg0: i32) -> (i32, i32) {
    %c0_i32 = arith.constant 0 : i32
    %c0_i32_0 = arith.constant 0 : i32
    %c0_i32_1 = arith.constant 0 : i32
    return %c0_i32, %c0_i32_0 : i32, i32
  }
  func.func @transform_7(%arg0: i32) -> (i32, i32) {
    %c0_i32 = arith.constant 0 : i32
    %c0_i32_0 = arith.constant 0 : i32
    %c0_i32_1 = arith.constant 0 : i32
    return %c0_i32, %c0_i32_0 : i32, i32
  }
  func.func @transform_8(%arg0: i32) -> (i32, i32) {
    %c0_i32 = arith.constant 0 : i32
    %c0_i32_0 = arith.constant 0 : i32
    %c0_i32_1 = arith.constant 0 : i32
    return %c0_i32, %c0_i32_0 : i32, i32
  }
  func.func @transform_9(%arg0: i32) -> (i32, i32) {
    %c0_i32 = arith.constant 0 : i32
    %c0_i32_0 = arith.constant 0 : i32
    %c0_i32_1 = arith.constant 0 : i32
    return %c0_i32, %c0_i32_0 : i32, i32
  }
  func.func @transform_10(%arg0: i32) -> (i32, i32) {
    %c0_i32 = arith.constant 0 : i32
    %c0_i32_0 = arith.constant 0 : i32
    %c0_i32_1 = arith.constant 0 : i32
    return %c0_i32, %c0_i32_0 : i32, i32
  }
  func.func @transform_11(%arg0: i32) -> (i32, i32) {
    %c0_i32 = arith.constant 0 : i32
    %c0_i32_0 = arith.constant 0 : i32
    %c0_i32_1 = arith.constant 0 : i32
    return %c0_i32, %c0_i32_0 : i32, i32
  }
  func.func @transform_12(%arg0: i32) -> (i32, i32) {
    %c0_i32 = arith.constant 0 : i32
    %c0_i32_0 = arith.constant 0 : i32
    %c0_i32_1 = arith.constant 0 : i32
    return %c0_i32, %c0_i32_0 : i32, i32
  }
  func.func @transform_13(%arg0: i32) -> (i32, i32) {
    %c0_i32 = arith.constant 0 : i32
    %c0_i32_0 = arith.constant 0 : i32
    %c0_i32_1 = arith.constant 0 : i32
    return %c0_i32, %c0_i32_0 : i32, i32
  }
  func.func @transform_14(%arg0: i32) -> (i32, i32) {
    %c0_i32 = arith.constant 0 : i32
    %c0_i32_0 = arith.constant 0 : i32
    %c0_i32_1 = arith.constant 0 : i32
    return %c0_i32, %c0_i32_0 : i32, i32
  }
  func.func @transform_15(%arg0: i32) -> (i32, i32) {
    %c0_i32 = arith.constant 0 : i32
    %c0_i32_0 = arith.constant 0 : i32
    %c0_i32_1 = arith.constant 0 : i32
    return %c0_i32, %c0_i32_0 : i32, i32
  }
  func.func @transform_16(%arg0: i32) -> (i32, i32) {
    %c0_i32 = arith.constant 0 : i32
    %c0_i32_0 = arith.constant 0 : i32
    %c0_i32_1 = arith.constant 0 : i32
    return %c0_i32, %c0_i32_0 : i32, i32
  }
  func.func @transform_17(%arg0: i32) -> (i32, i32) {
    %c0_i32 = arith.constant 0 : i32
    %c0_i32_0 = arith.constant 0 : i32
    %c0_i32_1 = arith.constant 0 : i32
    return %c0_i32, %c0_i32_0 : i32, i32
  }
  func.func @transform_18(%arg0: i32) -> (i32, i32) {
    %c0_i32 = arith.constant 0 : i32
    %c0_i32_0 = arith.constant 0 : i32
    %c0_i32_1 = arith.constant 0 : i32
    return %c0_i32, %c0_i32_0 : i32, i32
  }
  func.func @transform_19(%arg0: i32) -> (i32, i32) {
    %c0_i32 = arith.constant 0 : i32
    %c0_i32_0 = arith.constant 0 : i32
    %c0_i32_1 = arith.constant 0 : i32
    return %c0_i32, %c0_i32_0 : i32, i32
  }
  func.func @transform_20(%arg0: i32) -> (i32, i32) {
    %c0_i32 = arith.constant 0 : i32
    %c0_i32_0 = arith.constant 0 : i32
    %c0_i32_1 = arith.constant 0 : i32
    return %c0_i32, %c0_i32_0 : i32, i32
  }
  func.func @transform_21(%arg0: i32) -> (i32, i32) {
    %c0_i32 = arith.constant 0 : i32
    %c0_i32_0 = arith.constant 0 : i32
    %c0_i32_1 = arith.constant 0 : i32
    return %c0_i32, %c0_i32_0 : i32, i32
  }
  func.func @transform_22(%arg0: i32) -> (i32, i32) {
    %c0_i32 = arith.constant 0 : i32
    %c0_i32_0 = arith.constant 0 : i32
    %c0_i32_1 = arith.constant 0 : i32
    return %c0_i32, %c0_i32_0 : i32, i32
  }
}

</mosaic_0001>

<llo_original>
// kernel: model_forward.1
$region0: #{model_forward.1}
  #allocation0 [shape = 'u32[]', space=smem, size = 0x4, offset = 0x4, fixed_abs, tag = 'smem constant byte address 0x4 - core index']
  #allocation1 [shape = 'u32[72,128]{1,0:T(1,128)}', space=vmem, size = 0x9000, scoped, tag = 'internal scratch']
  %s0 = inlined_call_operand.vmem [shape: f32[2], index: 0, kind: input, shape index: {}]
  %s1 = inlined_call_operand.vmem [shape: f32[3], index: 1, kind: input, shape index: {}]
  %s2 = inlined_call_operand.vmem [shape: f32[3], index: 2, kind: input, shape index: {}]
  %s3 = inlined_call_operand.vmem [shape: f32[16,16], index: 3, kind: input, shape index: {}]
  %s4 = inlined_call_operand.vmem [shape: f32[24,24], index: 4, kind: input, shape index: {}]
  %s5 = inlined_call_operand.vmem [shape: f32[40,40], index: 5, kind: input, shape index: {}]
  %s6 = inlined_call_operand.vmem [shape: f32[16,32], index: 6, kind: input, shape index: {}]
  %s7 = inlined_call_operand.vmem [shape: f32[24,32], index: 7, kind: input, shape index: {}]
  %s8 = inlined_call_operand.vmem [shape: f32[32,16], index: 8, kind: input, shape index: {}]
  %s9 = inlined_call_operand.vmem [shape: f32[32,16], index: 9, kind: input, shape index: {}]
  %s10 = inlined_call_operand.vmem [shape: f32[32,16], index: 10, kind: input, shape index: {}]
  %s11 = inlined_call_operand.vmem [shape: f32[32,16], index: 11, kind: input, shape index: {}]
  %s12 = inlined_call_operand.vmem [shape: f32[1,16], index: 12, kind: input, shape index: {}]
  %s13 = inlined_call_operand.vmem [shape: f32[1,16], index: 13, kind: input, shape index: {}]
  %s14 = inlined_call_operand.vmem [shape: f32[16,32], index: 14, kind: input, shape index: {}]
  %s15 = inlined_call_operand.vmem [shape: f32[16,32], index: 15, kind: input, shape index: {}]
  %s16 = inlined_call_operand.vmem [shape: f32[16,32], index: 16, kind: input, shape index: {}]
  %s17 = inlined_call_operand.vmem [shape: f32[16,32], index: 17, kind: input, shape index: {}]
  %s18 = inlined_call_operand.vmem [shape: f32[1,32], index: 18, kind: input, shape index: {}]
  %s19 = inlined_call_operand.vmem [shape: f32[1,32], index: 19, kind: input, shape index: {}]
  %s20 = inlined_call_operand.hbm [shape: f32[16,32], index: 20, kind: output, shape index: {0}]
  %s21 = inlined_call_operand.hbm [shape: f32[24,32], index: 21, kind: output, shape index: {1}]
  %s22 = inlined_call_operand.hbm [shape: f32[1,1], index: 22, kind: output, shape index: {2}]
  %23 = xla_tuple %s20, %s21, %s22
  %s24 = sld [smem:[#allocation0]]
  $region118: #{model_forward.1} parent=0
    _
  %s26 = ssub.s32 1, %s24
  %s27 = scalar_select 0, %s26, %s24
  $region1: #{model_forward.1} parent=0
    #allocation2 [shape = 'u8[512]{0}', space=smem, size = 0x200, scoped, tag = 'input window, operand 0, single buffered']
    #allocation3 [shape = 's32[1]{0}', space=sflag, size = 0x4, scoped, tag = 'scoped memory for model_forward.1']
    #allocation4 [shape = 's32[1]{0}', space=sflag, size = 0x4, scoped, tag = 'scoped memory for model_forward.1']
    #allocation5 [shape = 'u8[512]{0}', space=smem, size = 0x200, scoped, tag = 'input window, operand 1, single buffered']
    #allocation6 [shape = 's32[1]{0}', space=sflag, size = 0x4, scoped, tag = 'scoped memory for model_forward.1']
    #allocation7 [shape = 'u8[512]{0}', space=smem, size = 0x200, scoped, tag = 'input window, operand 2, single buffered']
    #allocation8 [shape = 'u8[8192]{0}', space=vmem, size = 0x2000, scoped, tag = 'output window, operand 0, single buffered']
    #allocation9 [shape = 'u8[12288]{0}', space=vmem, size = 0x3000, scoped, tag = 'output window, operand 1, single buffered']
    #allocation10 [shape = 's32[1]{0}', space=sflag, size = 0x4, scoped, tag = 'scoped memory for model_forward.1']
    #allocation11 [shape = 'u8[512]{0}', space=vmem, size = 0x400, scoped, tag = 'output window, operand 2, single buffered']
    %28 = vsyncpa [#allocation4], 0
    %29 = vsyncpa [#allocation6], 0
    %30 = vsyncpa [#allocation3], 0
    %31 = vsyncpa [#allocation10], 0
    // Predicated region
    $region2: #{model_forward.1} parent=1 // pred_check
      _
    $region3: #{model_forward.1} parent=1 // pred_check_branch
      %33 = sbr.rel (0) target = $region5
    $region4: #{model_forward.1} parent=1 // pred_region
      %35 = vsyncadd [#allocation4], 0
      %s37 = sshll.u32 %s0, 4
      %s38 = int_to_ptr.vmem [resolvable:$true] %s37
      %40 = dma.vmem_to_smem %s38, 16, [#allocation2], [#allocation4]
    $region5: #{model_forward.1} parent=1 // pred_fallthru
      _
    // Predicated region
    $region6: #{model_forward.1} parent=1 // pred_check
      _
    $region7: #{model_forward.1} parent=1 // pred_check_branch
      %42 = sbr.rel (0) target = $region9
    $region8: #{model_forward.1} parent=1 // pred_region
      %44 = vsyncadd [#allocation6], 0
      %s46 = sshll.u32 %s1, 4
      %s47 = int_to_ptr.vmem [resolvable:$true] %s46
      %49 = dma.vmem_to_smem %s47, 16, [#allocation5], [#allocation6]
    $region9: #{model_forward.1} parent=1 // pred_fallthru
      _
    // Predicated region
    $region10: #{model_forward.1} parent=1 // pred_check
      _
    $region11: #{model_forward.1} parent=1 // pred_check_branch
      %51 = sbr.rel (0) target = $region13
    $region12: #{model_forward.1} parent=1 // pred_region
      %53 = vsyncadd [#allocation6], 0
      %s55 = sshll.u32 %s2, 4
      %s56 = int_to_ptr.vmem [resolvable:$true] %s55
      %58 = dma.vmem_to_smem %s56, 16, [#allocation7], [#allocation6]
    $region13: #{model_forward.1} parent=1 // pred_fallthru
      _
    // Predicated region
    $region14: #{model_forward.1} parent=1 // pred_check
      _
    $region15: #{model_forward.1} parent=1 // pred_check_branch
      %60 = sbr.rel (0) target = $region17
    $region16: #{model_forward.1} parent=1 // pred_region
      _
    $region17: #{model_forward.1} parent=1 // pred_fallthru
      _
    // Predicated region
    $region18: #{model_forward.1} parent=1 // pred_check
      _
    $region19: #{model_forward.1} parent=1 // pred_check_branch
      %62 = sbr.rel (0) target = $region21
    $region20: #{model_forward.1} parent=1 // pred_region
      _
    $region21: #{model_forward.1} parent=1 // pred_fallthru
      _
    // Predicated region
    $region22: #{model_forward.1} parent=1 // pred_check
      _
    $region23: #{model_forward.1} parent=1 // pred_check_branch
      %64 = sbr.rel (0) target = $region25
    $region24: #{model_forward.1} parent=1 // pred_region
      _
    $region25: #{model_forward.1} parent=1 // pred_fallthru
      _
    // Predicated region
    $region26: #{model_forward.1} parent=1 // pred_check
      _
    $region27: #{model_forward.1} parent=1 // pred_check_branch
      %66 = sbr.rel (0) target = $region29
    $region28: #{model_forward.1} parent=1 // pred_region
      _
    $region29: #{model_forward.1} parent=1 // pred_fallthru
      _
    // Predicated region
    $region30: #{model_forward.1} parent=1 // pred_check
      _
    $region31: #{model_forward.1} parent=1 // pred_check_branch
      %68 = sbr.rel (0) target = $region33
    $region32: #{model_forward.1} parent=1 // pred_region
      _
    $region33: #{model_forward.1} parent=1 // pred_fallthru
      _
    // Predicated region
    $region34: #{model_forward.1} parent=1 // pred_check
      _
    $region35: #{model_forward.1} parent=1 // pred_check_branch
      %70 = sbr.rel (0) target = $region37
    $region36: #{model_forward.1} parent=1 // pred_region
      _
    $region37: #{model_forward.1} parent=1 // pred_fallthru
      _
    // Predicated region
    $region38: #{model_forward.1} parent=1 // pred_check
      _
    $region39: #{model_forward.1} parent=1 // pred_check_branch
      %72 = sbr.rel (0) target = $region41
    $region40: #{model_forward.1} parent=1 // pred_region
      _
    $region41: #{model_forward.1} parent=1 // pred_fallthru
      _
    // Predicated region
    $region42: #{model_forward.1} parent=1 // pred_check
      _
    $region43: #{model_forward.1} parent=1 // pred_check_branch
      %74 = sbr.rel (0) target = $region45
    $region44: #{model_forward.1} parent=1 // pred_region
      _
    $region45: #{model_forward.1} parent=1 // pred_fallthru
      _
    // Predicated region
    $region46: #{model_forward.1} parent=1 // pred_check
      _
    $region47: #{model_forward.1} parent=1 // pred_check_branch
      %76 = sbr.rel (0) target = $region49
    $region48: #{model_forward.1} parent=1 // pred_region
      _
    $region49: #{model_forward.1} parent=1 // pred_fallthru
      _
    // Predicated region
    $region50: #{model_forward.1} parent=1 // pred_check
      _
    $region51: #{model_forward.1} parent=1 // pred_check_branch
      %78 = sbr.rel (0) target = $region53
    $region52: #{model_forward.1} parent=1 // pred_region
      _
    $region53: #{model_forward.1} parent=1 // pred_fallthru
      _
    // Predicated region
    $region54: #{model_forward.1} parent=1 // pred_check
      _
    $region55: #{model_forward.1} parent=1 // pred_check_branch
      %80 = sbr.rel (0) target = $region57
    $region56: #{model_forward.1} parent=1 // pred_region
      _
    $region57: #{model_forward.1} parent=1 // pred_fallthru
      _
    // Predicated region
    $region58: #{model_forward.1} parent=1 // pred_check
      _
    $region59: #{model_forward.1} parent=1 // pred_check_branch
      %82 = sbr.rel (0) target = $region61
    $region60: #{model_forward.1} parent=1 // pred_region
      _
    $region61: #{model_forward.1} parent=1 // pred_fallthru
      _
    // Predicated region
    $region62: #{model_forward.1} parent=1 // pred_check
      _
    $region63: #{model_forward.1} parent=1 // pred_check_branch
      %84 = sbr.rel (0) target = $region65
    $region64: #{model_forward.1} parent=1 // pred_region
      _
    $region65: #{model_forward.1} parent=1 // pred_fallthru
      _
    // Predicated region
    $region66: #{model_forward.1} parent=1 // pred_check
      _
    $region67: #{model_forward.1} parent=1 // pred_check_branch
      %86 = sbr.rel (0) target = $region69
    $region68: #{model_forward.1} parent=1 // pred_region
      _
    $region69: #{model_forward.1} parent=1 // pred_fallthru
      _
    // Predicated region
    $region70: #{model_forward.1} parent=1 // pred_check
      _
    $region71: #{model_forward.1} parent=1 // pred_check_branch
      %88 = sbr.rel (0) target = $region73
    $region72: #{model_forward.1} parent=1 // pred_region
      _
    $region73: #{model_forward.1} parent=1 // pred_fallthru
      _
    // Predicated region
    $region74: #{model_forward.1} parent=1 // pred_check
      _
    $region75: #{model_forward.1} parent=1 // pred_check_branch
      %90 = sbr.rel (0) target = $region77
    $region76: #{model_forward.1} parent=1 // pred_region
      _
    $region77: #{model_forward.1} parent=1 // pred_fallthru
      _
    // Predicated region
    $region78: #{model_forward.1} parent=1 // pred_check
      _
    $region79: #{model_forward.1} parent=1 // pred_check_branch
      %92 = sbr.rel (0) target = $region81
    $region80: #{model_forward.1} parent=1 // pred_region
      _
    $region81: #{model_forward.1} parent=1 // pred_fallthru
      _
    // Predicated region
    $region82: #{model_forward.1} parent=1 // pred_check
      _
    $region83: #{model_forward.1} parent=1 // pred_check_branch
      %94 = sbr.rel (0) target = $region85
    $region84: #{model_forward.1} parent=1 // pred_region
      %96 = dma.done [#allocation4], 16
    $region85: #{model_forward.1} parent=1 // pred_fallthru
      _
    // Predicated region
    $region86: #{model_forward.1} parent=1 // pred_check
      _
    $region87: #{model_forward.1} parent=1 // pred_check_branch
      %98 = sbr.rel (0) target = $region89
    $region88: #{model_forward.1} parent=1 // pred_region
      %100 = dma.done [#allocation6], 16
    $region89: #{model_forward.1} parent=1 // pred_fallthru
      _
    // Predicated region
    $region90: #{model_forward.1} parent=1 // pred_check
      _
    $region91: #{model_forward.1} parent=1 // pred_check_branch
      %102 = sbr.rel (0) target = $region93
    $region92: #{model_forward.1} parent=1 // pred_region
      %104 = dma.done [#allocation6], 16
    $region93: #{model_forward.1} parent=1 // pred_fallthru
      _
    %105 = sfence
    %v106 = vld [vmem:[%s3] sm:$0xff]
    %v107 = vld [vmem:[%s3 + $0x8] sm:$0xff]
    %v108 = vld [vmem:[%s4] sm:$0xff]
    %v109 = vld [vmem:[%s4 + $0x8] sm:$0xff]
    %v110 = vld [vmem:[%s4 + $0x10] sm:$0xff]
    %v111 = vld [vmem:[%s5] sm:$0xff]
    %v112 = vld [vmem:[%s5 + $0x8] sm:$0xff]
    %v113 = vld [vmem:[%s5 + $0x10] sm:$0xff]
    %v114 = vld [vmem:[%s5 + $0x18] sm:$0xff]
    %v115 = vld [vmem:[%s5 + $0x20] sm:$0xff]
    %vm116 = vcmask 130048
    %v117 = vsel %vm116, %v106, 0.0
    %118 = vadd.xlane.f32.xlu0 %v117
    %v119 = vpop.xlane.xlu0 %118
    %v120 = vsel %vm116, %v107, 0.0
    %121 = vadd.xlane.f32.xlu0 %v120
    %v122 = vpop.xlane.xlu0 %121
    %vm123 = vcmp.gt.f32.partialorder %v119, 0.0
    %vm124 = vcmp.gt.f32.partialorder %v122, 0.0
    %v125 = vsel %vm123, %v119, 1.0
    %v126 = vsel %vm124, %v122, 1.0
    %v127 = vrsqrt.pop %v125
    %v128 = vmul.f32 %v127, %v125
    %v129 = vmul.f32 %v128, %v127
    %v130 = vmul.f32 0.5, %v129
    %v131 = vsub.f32 1.5, %v130
    %v132 = vmul.f32 %v127, %v131
    %vm133 = vweird.f32 %v125
    %vm134 = vweird.f32 %v127
    %vm135 = vmor %vm133, %vm134
    %v136 = vsel %vm135, %v127, %v132
    %v137 = vrsqrt.pop %v126
    %v138 = vmul.f32 %v137, %v126
    %v139 = vmul.f32 %v138, %v137
    %v140 = vmul.f32 0.5, %v139
    %v141 = vsub.f32 1.5, %v140
    %v142 = vmul.f32 %v137, %v141
    %vm143 = vweird.f32 %v126
    %vm144 = vweird.f32 %v137
    %vm145 = vmor %vm143, %vm144
    %v146 = vsel %vm145, %v137, %v142
    %v147 = vsel %vm123, %v136, 0.0
    %v148 = vsel %vm124, %v146, 0.0
    %vm149 = vcmask 195584
    %v150 = vsel %vm149, %v108, 0.0
    %151 = vadd.xlane.f32.xlu0 %v150
    %v152 = vpop.xlane.xlu0 %151
    %v153 = vsel %vm149, %v109, 0.0
    %154 = vadd.xlane.f32.xlu0 %v153
    %v155 = vpop.xlane.xlu0 %154
    %v156 = vsel %vm149, %v110, 0.0
    %157 = vadd.xlane.f32.xlu0 %v156
    %v158 = vpop.xlane.xlu0 %157
    %vm159 = vcmp.gt.f32.partialorder %v152, 0.0
    %vm160 = vcmp.gt.f32.partialorder %v155, 0.0
    %vm161 = vcmp.gt.f32.partialorder %v158, 0.0
    %v162 = vsel %vm159, %v152, 1.0
    %v163 = vsel %vm160, %v155, 1.0
    %v164 = vsel %vm161, %v158, 1.0
    %v165 = vrsqrt.pop %v162
    %v166 = vmul.f32 %v165, %v162
    %v167 = vmul.f32 %v166, %v165
    %v168 = vmul.f32 0.5, %v167
    %v169 = vsub.f32 1.5, %v168
    %v170 = vmul.f32 %v165, %v169
    %vm171 = vweird.f32 %v162
    %vm172 = vweird.f32 %v165
    %vm173 = vmor %vm171, %vm172
    %v174 = vsel %vm173, %v165, %v170
    %v175 = vrsqrt.pop %v163
    %v176 = vmul.f32 %v175, %v163
    %v177 = vmul.f32 %v176, %v175
    %v178 = vmul.f32 0.5, %v177
    %v179 = vsub.f32 1.5, %v178
    %v180 = vmul.f32 %v175, %v179
    %vm181 = vweird.f32 %v163
    %vm182 = vweird.f32 %v175
    %vm183 = vmor %vm181, %vm182
    %v184 = vsel %vm183, %v175, %v180
    %v185 = vrsqrt.pop %v164
    %v186 = vmul.f32 %v185, %v164
    %v187 = vmul.f32 %v186, %v185
    %v188 = vmul.f32 0.5, %v187
    %v189 = vsub.f32 1.5, %v188
    %v190 = vmul.f32 %v185, %v189
    %vm191 = vweird.f32 %v164
    %vm192 = vweird.f32 %v185
    %vm193 = vmor %vm191, %vm192
    %v194 = vsel %vm193, %v185, %v190
    %v195 = vsel %vm159, %v174, 0.0
    %v196 = vsel %vm160, %v184, 0.0
    %v197 = vsel %vm161, %v194, 0.0
    %vm198 = vcmask 326656
    %v199 = vsel %vm198, %v111, 0.0
    %200 = vadd.xlane.f32.xlu0 %v199
    %v201 = vpop.xlane.xlu0 %200
    %v202 = vsel %vm198, %v112, 0.0
    %203 = vadd.xlane.f32.xlu0 %v202
    %v204 = vpop.xlane.xlu0 %203
    %v205 = vsel %vm198, %v113, 0.0
    %206 = vadd.xlane.f32.xlu0 %v205
    %v207 = vpop.xlane.xlu0 %206
    %v208 = vsel %vm198, %v114, 0.0
    %209 = vadd.xlane.f32.xlu0 %v208
    %v210 = vpop.xlane.xlu0 %209
    %v211 = vsel %vm198, %v115, 0.0
    %212 = vadd.xlane.f32.xlu0 %v211
    %v213 = vpop.xlane.xlu0 %212
    %vm214 = vcmp.gt.f32.partialorder %v201, 0.0
    %vm215 = vcmp.gt.f32.partialorder %v204, 0.0
    %vm216 = vcmp.gt.f32.partialorder %v207, 0.0
    %vm217 = vcmp.gt.f32.partialorder %v210, 0.0
    %vm218 = vcmp.gt.f32.partialorder %v213, 0.0
    %v219 = vsel %vm214, %v201, 1.0
    %v220 = vsel %vm215, %v204, 1.0
    %v221 = vsel %vm216, %v207, 1.0
    %v222 = vsel %vm217, %v210, 1.0
    %v223 = vsel %vm218, %v213, 1.0
    %v224 = vrsqrt.pop %v219
    %v225 = vmul.f32 %v224, %v219
    %v226 = vmul.f32 %v225, %v224
    %v227 = vmul.f32 0.5, %v226
    %v228 = vsub.f32 1.5, %v227
    %v229 = vmul.f32 %v224, %v228
    %vm230 = vweird.f32 %v219
    %vm231 = vweird.f32 %v224
    %vm232 = vmor %vm230, %vm231
    %v233 = vsel %vm232, %v224, %v229
    %v234 = vrsqrt.pop %v220
    %v235 = vmul.f32 %v234, %v220
    %v236 = vmul.f32 %v235, %v234
    %v237 = vmul.f32 0.5, %v236
    %v238 = vsub.f32 1.5, %v237
    %v239 = vmul.f32 %v234, %v238
    %vm240 = vweird.f32 %v220
    %vm241 = vweird.f32 %v234
    %vm242 = vmor %vm240, %vm241
    %v243 = vsel %vm242, %v234, %v239
    %v244 = vrsqrt.pop %v221
    %v245 = vmul.f32 %v244, %v221
    %v246 = vmul.f32 %v245, %v244
    %v247 = vmul.f32 0.5, %v246
    %v248 = vsub.f32 1.5, %v247
    %v249 = vmul.f32 %v244, %v248
    %vm250 = vweird.f32 %v221
    %vm251 = vweird.f32 %v244
    %vm252 = vmor %vm250, %vm251
    %v253 = vsel %vm252, %v244, %v249
    %v254 = vrsqrt.pop %v222
    %v255 = vmul.f32 %v254, %v222
    %v256 = vmul.f32 %v255, %v254
    %v257 = vmul.f32 0.5, %v256
    %v258 = vsub.f32 1.5, %v257
    %v259 = vmul.f32 %v254, %v258
    %vm260 = vweird.f32 %v222
    %vm261 = vweird.f32 %v254
    %vm262 = vmor %vm260, %vm261
    %v263 = vsel %vm262, %v254, %v259
    %v264 = vrsqrt.pop %v223
    %v265 = vmul.f32 %v264, %v223
    %v266 = vmul.f32 %v265, %v264
    %v267 = vmul.f32 0.5, %v266
    %v268 = vsub.f32 1.5, %v267
    %v269 = vmul.f32 %v264, %v268
    %vm270 = vweird.f32 %v223
    %vm271 = vweird.f32 %v264
    %vm272 = vmor %vm270, %vm271
    %v273 = vsel %vm272, %v264, %v269
    %v274 = vsel %vm214, %v233, 0.0
    %v275 = vsel %vm215, %v243, 0.0
    %v276 = vsel %vm216, %v253, 0.0
    %v277 = vsel %vm217, %v263, 0.0
    %v278 = vsel %vm218, %v273, 0.0
    %v279 = vld [vmem:[%s8] sm:$0xff]
    %v280 = vld [vmem:[%s8 + $0x8] sm:$0xff]
    %v281 = vld [vmem:[%s8 + $0x10] sm:$0xff]
    %v282 = vld [vmem:[%s8 + $0x18] sm:$0xff]
    %v283 = vld [vmem:[%s9] sm:$0xff]
    %v284 = vld [vmem:[%s9 + $0x8] sm:$0xff]
    %v285 = vld [vmem:[%s9 + $0x10] sm:$0xff]
    %v286 = vld [vmem:[%s9 + $0x18] sm:$0xff]
    %291 = vrot.lane.b32.xlu0 %v283, 16
    %v292 = vpop.permute.xlu0 %291
    %293 = vrot.lane.b32.xlu0 %v284, 16
    %v294 = vpop.permute.xlu0 %293
    %295 = vrot.lane.b32.xlu0 %v285, 16
    %v296 = vpop.permute.xlu0 %295
    %297 = vrot.lane.b32.xlu0 %v286, 16
    %v298 = vpop.permute.xlu0 %297
    %v303 = vsel %vm116, %v279, %v292
    %v304 = vsel %vm116, %v280, %v294
    %v305 = vsel %vm116, %v281, %v296
    %v306 = vsel %vm116, %v282, %v298
    %v307 = vld [vmem:[%s10] sm:$0xff]
    %v308 = vld [vmem:[%s10 + $0x8] sm:$0xff]
    %v309 = vld [vmem:[%s10 + $0x10] sm:$0xff]
    %v310 = vld [vmem:[%s10 + $0x18] sm:$0xff]
    %v311 = vld [vmem:[%s11] sm:$0xff]
    %v312 = vld [vmem:[%s11 + $0x8] sm:$0xff]
    %v313 = vld [vmem:[%s11 + $0x10] sm:$0xff]
    %v314 = vld [vmem:[%s11 + $0x18] sm:$0xff]
    %319 = vrot.lane.b32.xlu0 %v311, 16
    %v320 = vpop.permute.xlu0 %319
    %321 = vrot.lane.b32.xlu0 %v312, 16
    %v322 = vpop.permute.xlu0 %321
    %323 = vrot.lane.b32.xlu0 %v313, 16
    %v324 = vpop.permute.xlu0 %323
    %325 = vrot.lane.b32.xlu0 %v314, 16
    %v326 = vpop.permute.xlu0 %325
    %v331 = vsel %vm116, %v307, %v320
    %v332 = vsel %vm116, %v308, %v322
    %v333 = vsel %vm116, %v309, %v324
    %v334 = vsel %vm116, %v310, %v326
    %v335 = vld [vmem:[%s14] sm:$0xff]
    %v336 = vld [vmem:[%s14 + $0x8] sm:$0xff]
    %v337 = vld [vmem:[%s15] sm:$0xff]
    %v338 = vld [vmem:[%s15 + $0x8] sm:$0xff]
    %341 = vrot.lane.b32.xlu0 %v337, 32
    %v342 = vpop.permute.xlu0 %341
    %343 = vrot.lane.b32.xlu0 %v338, 32
    %v344 = vpop.permute.xlu0 %343
    %vm347 = vcmask 261120
    %v348 = vsel %vm347, %v335, %v342
    %v349 = vsel %vm347, %v336, %v344
    %v350 = vld [vmem:[%s16] sm:$0xff]
    %v351 = vld [vmem:[%s16 + $0x8] sm:$0xff]
    %v352 = vld [vmem:[%s17] sm:$0xff]
    %v353 = vld [vmem:[%s17 + $0x8] sm:$0xff]
    %356 = vrot.lane.b32.xlu0 %v352, 32
    %v357 = vpop.permute.xlu0 %356
    %358 = vrot.lane.b32.xlu0 %v353, 32
    %v359 = vpop.permute.xlu0 %358
    %v362 = vsel %vm347, %v350, %v357
    %v363 = vsel %vm347, %v351, %v359
    %v364 = vld [vmem:[%s12] sm:$0x1]
    %v365 = vld [vmem:[%s13] sm:$0x1]
    %v366 = vld [vmem:[%s18] sm:$0x1]
    %v367 = vld [vmem:[%s19] sm:$0x1]
    %v368 = vld [vmem:[%s6] sm:$0xff]
    %v369 = vld [vmem:[%s6 + $0x8] sm:$0xff]
    %v370 = vld [vmem:[%s7] sm:$0xff]
    %v371 = vld [vmem:[%s7 + $0x8] sm:$0xff]
    %v372 = vld [vmem:[%s7 + $0x10] sm:$0xff]
    %s373 = sld [smem:[#allocation2]]
    %s374 = sld [smem:[#allocation2 + $0x1]]
    %v376 = vsel %vm347, %v368, 0
    %v379 = vsel %vm347, %v369, 0
    %381 = vmatpush.msra.mxu0 0.0
    %382 = vmatpush.msra.mxu0 0.0
    %383 = vmatpush.msra.mxu0 0.0
    %384 = vmatpush.msra.mxu0 0.0
    %385 = vmatpush.msra.mxu0 0.0
    %386 = vmatpush.msra.mxu0 0.0
    %387 = vmatpush.msra.mxu0 0.0
    %388 = vmatpush.msra.mxu0 0.0
    %389 = vmatpush.msra.mxu0 0.0
    %390 = vmatpush.msra.mxu0 0.0
    %391 = vmatpush.msra.mxu0 0.0
    %392 = vmatpush.msra.mxu0 0.0
    %393 = vmatpush.msra.mxu0 %v306
    %394 = vmatpush.msra.mxu0 %v305
    %395 = vmatpush.msra.mxu0 %v304
    %396 = vmatpush.msra.mxu0 %v303
    %397 = vmatmul.f32.gmra.mxu0 %v376
    %v398 = vpop.f32.mrf.mxu0
    %v399 = vadd.f32 0.0, %v398
    %400 = vmatmul.f32.gmra.mxu0 %v379
    %v401 = vpop.f32.mrf.mxu0
    %v402 = vadd.f32 0.0, %v401
    %403 = vdwg.mxu0
    %v405 = vperm.slane %v364, 0
    %v407 = vadd.f32 %v399, %v405
    %v408 = vadd.f32 %v402, %v405
    %vm409 = vcmp.ge.f32.partialorder %v407, 0.0
    %vm410 = vcmp.ge.f32.partialorder %v408, 0.0
    %v411 = vmul.f32 %v407, 0.01
    %v412 = vmul.f32 %v408, 0.01
    %v413 = vsel %vm409, %v407, %v411
    %v414 = vsel %vm410, %v408, %v412
    %417 = vrot.lane.b32.xlu0 %v413, 16
    %v418 = vpop.permute.xlu0 %417
    %419 = vrot.lane.b32.xlu0 %v414, 16
    %v420 = vpop.permute.xlu0 %419
    %v423 = vmul.f32 %v399, %v418
    %v424 = vmul.f32 %v402, %v420
    %v426 = vsel %vm347, %v370, 0
    %v429 = vsel %vm347, %v371, 0
    %v432 = vsel %vm347, %v372, 0
    %434 = vmatpush.msra.mxu0 0.0
    %435 = vmatpush.msra.mxu0 0.0
    %436 = vmatpush.msra.mxu0 0.0
    %437 = vmatpush.msra.mxu0 0.0
    %438 = vmatpush.msra.mxu0 0.0
    %439 = vmatpush.msra.mxu0 0.0
    %440 = vmatpush.msra.mxu0 0.0
    %441 = vmatpush.msra.mxu0 0.0
    %442 = vmatpush.msra.mxu0 0.0
    %443 = vmatpush.msra.mxu0 0.0
    %444 = vmatpush.msra.mxu0 0.0
    %445 = vmatpush.msra.mxu0 0.0
    %446 = vmatpush.msra.mxu0 %v334
    %447 = vmatpush.msra.mxu0 %v333
    %448 = vmatpush.msra.mxu0 %v332
    %449 = vmatpush.msra.mxu0 %v331
    %450 = vmatmul.f32.gmra.mxu0 %v426
    %v451 = vpop.f32.mrf.mxu0
    %v452 = vadd.f32 0.0, %v451
    %453 = vmatmul.f32.gmra.mxu0 %v429
    %v454 = vpop.f32.mrf.mxu0
    %v455 = vadd.f32 0.0, %v454
    %456 = vmatmul.f32.gmra.mxu0 %v432
    %v457 = vpop.f32.mrf.mxu0
    %v458 = vadd.f32 0.0, %v457
    %459 = vdwg.mxu0
    %v461 = vperm.slane %v365, 0
    %v463 = vadd.f32 %v452, %v461
    %v464 = vadd.f32 %v455, %v461
    %v465 = vadd.f32 %v458, %v461
    %vm466 = vcmp.ge.f32.partialorder %v463, 0.0
    %vm467 = vcmp.ge.f32.partialorder %v464, 0.0
    %vm468 = vcmp.ge.f32.partialorder %v465, 0.0
    %v469 = vmul.f32 %v463, 0.01
    %v470 = vmul.f32 %v464, 0.01
    %v471 = vmul.f32 %v465, 0.01
    %v472 = vsel %vm466, %v463, %v469
    %v473 = vsel %vm467, %v464, %v470
    %v474 = vsel %vm468, %v465, %v471
    %478 = vrot.lane.b32.xlu0 %v472, 16
    %v479 = vpop.permute.xlu0 %478
    %480 = vrot.lane.b32.xlu0 %v473, 16
    %v481 = vpop.permute.xlu0 %480
    %482 = vrot.lane.b32.xlu0 %v474, 16
    %v483 = vpop.permute.xlu0 %482
    %v487 = vmul.f32 %v452, %v479
    %v488 = vmul.f32 %v455, %v481
    %v489 = vmul.f32 %v458, %v483
    %s490 = sld [smem:[#allocation5]]
    %v491 = vstv %s490
    %v492 = vmul.f32 %v491, %v423
    %v493 = vmul.f32 %v491, %v424
    %v494 = vmul.f32 %v147, %v423
    %v495 = vmul.f32 %v148, %v424
    %498 = vrot.lane.b32.xlu0 %v494, 112
    %v499 = vpop.permute.xlu0 %498
    %500 = vrot.lane.b32.xlu0 %v495, 112
    %v501 = vpop.permute.xlu0 %500
    %v505 = vsel %vm116, %v106, 0
    %v508 = vsel %vm116, %v107, 0
    %510 = vmatpush.msra.mxu0 0.0
    %511 = vmatpush.msra.mxu0 0.0
    %512 = vmatpush.msra.mxu0 0.0
    %513 = vmatpush.msra.mxu0 0.0
    %514 = vmatpush.msra.mxu0 0.0
    %515 = vmatpush.msra.mxu0 0.0
    %516 = vmatpush.msra.mxu0 0.0
    %517 = vmatpush.msra.mxu0 0.0
    %518 = vmatpush.msra.mxu0 0.0
    %519 = vmatpush.msra.mxu0 0.0
    %520 = vmatpush.msra.mxu0 0.0
    %521 = vmatpush.msra.mxu0 0.0
    %522 = vmatpush.msra.mxu0 0.0
    %523 = vmatpush.msra.mxu0 0.0
    %524 = vmatpush.msra.mxu0 %v501
    %525 = vmatpush.msra.mxu0 %v499
    %526 = vmatmul.f32.gmra.mxu0 %v505
    %v527 = vpop.f32.mrf.mxu0
    %v528 = vadd.f32 0.0, %v527
    %529 = vmatmul.f32.gmra.mxu0 %v508
    %v530 = vpop.f32.mrf.mxu0
    %v531 = vadd.f32 0.0, %v530
    %532 = vdwg.mxu0
    %v533 = vmul.f32 %v147, %v528
    %v534 = vmul.f32 %v148, %v531
    %s535 = sld [smem:[#allocation5 + $0x1]]
    %v536 = vstv %s535
    %v537 = vmul.f32 %v536, %v533
    %v538 = vmul.f32 %v536, %v534
    %541 = vrot.lane.b32.xlu0 %v537, 16
    %v542 = vpop.permute.xlu0 %541
    %543 = vrot.lane.b32.xlu0 %v538, 16
    %v544 = vpop.permute.xlu0 %543
    %v547 = vadd.f32 %v492, %v542
    %v548 = vadd.f32 %v493, %v544
    %v549 = vmul.f32 %v147, %v533
    %v550 = vmul.f32 %v148, %v534
    %551 = vmatpush.msra.mxu0 0.0
    %552 = vmatpush.msra.mxu0 0.0
    %553 = vmatpush.msra.mxu0 0.0
    %554 = vmatpush.msra.mxu0 0.0
    %555 = vmatpush.msra.mxu0 0.0
    %556 = vmatpush.msra.mxu0 0.0
    %557 = vmatpush.msra.mxu0 0.0
    %558 = vmatpush.msra.mxu0 0.0
    %559 = vmatpush.msra.mxu0 0.0
    %560 = vmatpush.msra.mxu0 0.0
    %561 = vmatpush.msra.mxu0 0.0
    %562 = vmatpush.msra.mxu0 0.0
    %563 = vmatpush.msra.mxu0 0.0
    %564 = vmatpush.msra.mxu0 0.0
    %565 = vmatpush.msra.mxu0 %v550
    %566 = vmatpush.msra.mxu0 %v549
    %567 = vmatmul.f32.gmra.mxu0 %v505
    %v568 = vpop.f32.mrf.mxu0
    %v569 = vadd.f32 0.0, %v568
    %570 = vmatmul.f32.gmra.mxu0 %v508
    %v571 = vpop.f32.mrf.mxu0
    %v572 = vadd.f32 0.0, %v571
    %573 = vdwg.mxu0
    %v574 = vmul.f32 %v147, %v569
    %v575 = vmul.f32 %v148, %v572
    %s576 = sld [smem:[#allocation5 + $0x2]]
    %v577 = vstv %s576
    %v578 = vmul.f32 %v577, %v574
    %v579 = vmul.f32 %v577, %v575
    %582 = vrot.lane.b32.xlu0 %v578, 16
    %v583 = vpop.permute.xlu0 %582
    %584 = vrot.lane.b32.xlu0 %v579, 16
    %v585 = vpop.permute.xlu0 %584
    %v588 = vadd.f32 %v547, %v583
    %v589 = vadd.f32 %v548, %v585
    %s590 = sld [smem:[#allocation7]]
    %v591 = vstv %s590
    %v592 = vmul.f32 %v591, %v487
    %v593 = vmul.f32 %v591, %v488
    %v594 = vmul.f32 %v591, %v489
    %v595 = vmul.f32 %v195, %v487
    %v596 = vmul.f32 %v196, %v488
    %v597 = vmul.f32 %v197, %v489
    %601 = vrot.lane.b32.xlu0 %v595, 112
    %v602 = vpop.permute.xlu0 %601
    %603 = vrot.lane.b32.xlu0 %v596, 112
    %v604 = vpop.permute.xlu0 %603
    %605 = vrot.lane.b32.xlu0 %v597, 112
    %v606 = vpop.permute.xlu0 %605
    %v611 = vsel %vm149, %v108, 0
    %v614 = vsel %vm149, %v109, 0
    %v617 = vsel %vm149, %v110, 0
    %619 = vmatpush.msra.mxu0 0.0
    %620 = vmatpush.msra.mxu0 0.0
    %621 = vmatpush.msra.mxu0 0.0
    %622 = vmatpush.msra.mxu0 0.0
    %623 = vmatpush.msra.mxu0 0.0
    %624 = vmatpush.msra.mxu0 0.0
    %625 = vmatpush.msra.mxu0 0.0
    %626 = vmatpush.msra.mxu0 0.0
    %627 = vmatpush.msra.mxu0 0.0
    %628 = vmatpush.msra.mxu0 0.0
    %629 = vmatpush.msra.mxu0 0.0
    %630 = vmatpush.msra.mxu0 0.0
    %631 = vmatpush.msra.mxu0 0.0
    %632 = vmatpush.msra.mxu0 %v606
    %633 = vmatpush.msra.mxu0 %v604
    %634 = vmatpush.msra.mxu0 %v602
    %635 = vmatmul.f32.gmra.mxu0 %v611
    %v636 = vpop.f32.mrf.mxu0
    %v637 = vadd.f32 0.0, %v636
    %638 = vmatmul.f32.gmra.mxu0 %v614
    %v639 = vpop.f32.mrf.mxu0
    %v640 = vadd.f32 0.0, %v639
    %641 = vmatmul.f32.gmra.mxu0 %v617
    %v642 = vpop.f32.mrf.mxu0
    %v643 = vadd.f32 0.0, %v642
    %644 = vdwg.mxu0
    %v645 = vmul.f32 %v195, %v637
    %v646 = vmul.f32 %v196, %v640
    %v647 = vmul.f32 %v197, %v643
    %s648 = sld [smem:[#allocation7 + $0x1]]
    %v649 = vstv %s648
    %v650 = vmul.f32 %v649, %v645
    %v651 = vmul.f32 %v649, %v646
    %v652 = vmul.f32 %v649, %v647
    %656 = vrot.lane.b32.xlu0 %v650, 16
    %v657 = vpop.permute.xlu0 %656
    %658 = vrot.lane.b32.xlu0 %v651, 16
    %v659 = vpop.permute.xlu0 %658
    %660 = vrot.lane.b32.xlu0 %v652, 16
    %v661 = vpop.permute.xlu0 %660
    %v665 = vadd.f32 %v592, %v657
    %v666 = vadd.f32 %v593, %v659
    %v667 = vadd.f32 %v594, %v661
    %v668 = vmul.f32 %v195, %v645
    %v669 = vmul.f32 %v196, %v646
    %v670 = vmul.f32 %v197, %v647
    %671 = vmatpush.msra.mxu0 0.0
    %672 = vmatpush.msra.mxu0 0.0
    %673 = vmatpush.msra.mxu0 0.0
    %674 = vmatpush.msra.mxu0 0.0
    %675 = vmatpush.msra.mxu0 0.0
    %676 = vmatpush.msra.mxu0 0.0
    %677 = vmatpush.msra.mxu0 0.0
    %678 = vmatpush.msra.mxu0 0.0
    %679 = vmatpush.msra.mxu0 0.0
    %680 = vmatpush.msra.mxu0 0.0
    %681 = vmatpush.msra.mxu0 0.0
    %682 = vmatpush.msra.mxu0 0.0
    %683 = vmatpush.msra.mxu0 0.0
    %684 = vmatpush.msra.mxu0 %v670
    %685 = vmatpush.msra.mxu0 %v669
    %686 = vmatpush.msra.mxu0 %v668
    %687 = vmatmul.f32.gmra.mxu0 %v611
    %v688 = vpop.f32.mrf.mxu0
    %v689 = vadd.f32 0.0, %v688
    %690 = vmatmul.f32.gmra.mxu0 %v614
    %v691 = vpop.f32.mrf.mxu0
    %v692 = vadd.f32 0.0, %v691
    %693 = vmatmul.f32.gmra.mxu0 %v617
    %v694 = vpop.f32.mrf.mxu0
    %v695 = vadd.f32 0.0, %v694
    %696 = vdwg.mxu0
    %v697 = vmul.f32 %v195, %v689
    %v698 = vmul.f32 %v196, %v692
    %v699 = vmul.f32 %v197, %v695
    %s700 = sld [smem:[#allocation7 + $0x2]]
    %v701 = vstv %s700
    %v702 = vmul.f32 %v701, %v697
    %v703 = vmul.f32 %v701, %v698
    %v704 = vmul.f32 %v701, %v699
    %708 = vrot.lane.b32.xlu0 %v702, 16
    %v709 = vpop.permute.xlu0 %708
    %710 = vrot.lane.b32.xlu0 %v703, 16
    %v711 = vpop.permute.xlu0 %710
    %712 = vrot.lane.b32.xlu0 %v704, 16
    %v713 = vpop.permute.xlu0 %712
    %v717 = vadd.f32 %v665, %v709
    %v718 = vadd.f32 %v666, %v711
    %v719 = vadd.f32 %v667, %v713
    %v720 = vmul.f32 %v274, %v368
    %v721 = vmul.f32 %v275, %v369
    %v722 = vmul.f32 %v276, %v370
    %v723 = vmul.f32 %v277, %v371
    %v724 = vmul.f32 %v278, %v372
    %v726 = vsel %vm198, %v111, 0
    %v729 = vsel %vm198, %v112, 0
    %v732 = vsel %vm198, %v113, 0
    %v735 = vsel %vm198, %v114, 0
    %v738 = vsel %vm198, %v115, 0
    %740 = vmatpush.msra.mxu0 0.0
    %741 = vmatpush.msra.mxu0 0.0
    %742 = vmatpush.msra.mxu0 0.0
    %743 = vmatpush.msra.mxu0 0.0
    %744 = vmatpush.msra.mxu0 0.0
    %745 = vmatpush.msra.mxu0 0.0
    %746 = vmatpush.msra.mxu0 0.0
    %747 = vmatpush.msra.mxu0 0.0
    %748 = vmatpush.msra.mxu0 0.0
    %749 = vmatpush.msra.mxu0 0.0
    %750 = vmatpush.msra.mxu0 0.0
    %751 = vmatpush.msra.mxu0 %v724
    %752 = vmatpush.msra.mxu0 %v723
    %753 = vmatpush.msra.mxu0 %v722
    %754 = vmatpush.msra.mxu0 %v721
    %755 = vmatpush.msra.mxu0 %v720
    %756 = vmatmul.f32.gmra.mxu0 %v726
    %v757 = vpop.f32.mrf.mxu0
    %v758 = vadd.f32 0.0, %v757
    %759 = vmatmul.f32.gmra.mxu0 %v729
    %v760 = vpop.f32.mrf.mxu0
    %v761 = vadd.f32 0.0, %v760
    %762 = vmatmul.f32.gmra.mxu0 %v732
    %v763 = vpop.f32.mrf.mxu0
    %v764 = vadd.f32 0.0, %v763
    %765 = vmatmul.f32.gmra.mxu0 %v735
    %v766 = vpop.f32.mrf.mxu0
    %v767 = vadd.f32 0.0, %v766
    %768 = vmatmul.f32.gmra.mxu0 %v738
    %v769 = vpop.f32.mrf.mxu0
    %v770 = vadd.f32 0.0, %v769
    %771 = vdwg.mxu0
    %v772 = vmul.f32 %v274, %v758
    %v773 = vmul.f32 %v275, %v761
    %v774 = vmul.f32 %v276, %v764
    %v775 = vmul.f32 %v277, %v767
    %v776 = vmul.f32 %v278, %v770
    %779 = vrot.lane.b32.xlu0 %v588, 112
    %v780 = vpop.permute.xlu0 %779
    %781 = vrot.lane.b32.xlu0 %v589, 112
    %v782 = vpop.permute.xlu0 %781
    %v783 = vsel %vm116, %v780, 0
    %v785 = vsel %vm116, %v782, 0
    %787 = vmatpush.msra.mxu0 0.0
    %788 = vmatpush.msra.mxu0 0.0
    %789 = vmatpush.msra.mxu0 0.0
    %790 = vmatpush.msra.mxu0 0.0
    %791 = vmatpush.msra.mxu0 0.0
    %792 = vmatpush.msra.mxu0 0.0
    %793 = vmatpush.msra.mxu0 0.0
    %794 = vmatpush.msra.mxu0 0.0
    %795 = vmatpush.msra.mxu0 0.0
    %796 = vmatpush.msra.mxu0 0.0
    %797 = vmatpush.msra.mxu0 0.0
    %798 = vmatpush.msra.mxu0 0.0
    %799 = vmatpush.msra.mxu0 0.0
    %800 = vmatpush.msra.mxu0 0.0
    %801 = vmatpush.msra.mxu0 %v349
    %802 = vmatpush.msra.mxu0 %v348
    %803 = vmatmul.f32.gmra.mxu0 %v783
    %v804 = vpop.f32.mrf.mxu0
    %v805 = vadd.f32 0.0, %v804
    %806 = vmatmul.f32.gmra.mxu0 %v785
    %v807 = vpop.f32.mrf.mxu0
    %v808 = vadd.f32 0.0, %v807
    %809 = vdwg.mxu0
    %v811 = vperm.slane %v366, 0
    %v813 = vadd.f32 %v805, %v811
    %v814 = vadd.f32 %v808, %v811
    %vm815 = vcmp.ge.f32.partialorder %v813, 0.0
    %vm816 = vcmp.ge.f32.partialorder %v814, 0.0
    %v817 = vmul.f32 %v813, 0.01
    %v818 = vmul.f32 %v814, 0.01
    %v819 = vsel %vm815, %v813, %v817
    %v820 = vsel %vm816, %v814, %v818
    %823 = vrot.lane.b32.xlu0 %v819, 32
    %v824 = vpop.permute.xlu0 %823
    %825 = vrot.lane.b32.xlu0 %v820, 32
    %v826 = vpop.permute.xlu0 %825
    %v829 = vmul.f32 %v805, %v824
    %v830 = vmul.f32 %v808, %v826
    %834 = vrot.lane.b32.xlu0 %v717, 112
    %v835 = vpop.permute.xlu0 %834
    %836 = vrot.lane.b32.xlu0 %v718, 112
    %v837 = vpop.permute.xlu0 %836
    %838 = vrot.lane.b32.xlu0 %v719, 112
    %v839 = vpop.permute.xlu0 %838
    %v840 = vsel %vm116, %v835, 0
    %v842 = vsel %vm116, %v837, 0
    %v844 = vsel %vm116, %v839, 0
    %846 = vmatpush.msra.mxu0 0.0
    %847 = vmatpush.msra.mxu0 0.0
    %848 = vmatpush.msra.mxu0 0.0
    %849 = vmatpush.msra.mxu0 0.0
    %850 = vmatpush.msra.mxu0 0.0
    %851 = vmatpush.msra.mxu0 0.0
    %852 = vmatpush.msra.mxu0 0.0
    %853 = vmatpush.msra.mxu0 0.0
    %854 = vmatpush.msra.mxu0 0.0
    %855 = vmatpush.msra.mxu0 0.0
    %856 = vmatpush.msra.mxu0 0.0
    %857 = vmatpush.msra.mxu0 0.0
    %858 = vmatpush.msra.mxu0 0.0
    %859 = vmatpush.msra.mxu0 0.0
    %860 = vmatpush.msra.mxu0 %v363
    %861 = vmatpush.msra.mxu0 %v362
    %862 = vmatmul.f32.gmra.mxu0 %v840
    %v863 = vpop.f32.mrf.mxu0
    %v864 = vadd.f32 0.0, %v863
    %865 = vmatmul.f32.gmra.mxu0 %v842
    %v866 = vpop.f32.mrf.mxu0
    %v867 = vadd.f32 0.0, %v866
    %868 = vmatmul.f32.gmra.mxu0 %v844
    %v869 = vpop.f32.mrf.mxu0
    %v870 = vadd.f32 0.0, %v869
    %871 = vdwg.mxu0
    %v873 = vperm.slane %v367, 0
    %v875 = vadd.f32 %v864, %v873
    %v876 = vadd.f32 %v867, %v873
    %v877 = vadd.f32 %v870, %v873
    %vm878 = vcmp.ge.f32.partialorder %v875, 0.0
    %vm879 = vcmp.ge.f32.partialorder %v876, 0.0
    %vm880 = vcmp.ge.f32.partialorder %v877, 0.0
    %v881 = vmul.f32 %v875, 0.01
    %v882 = vmul.f32 %v876, 0.01
    %v883 = vmul.f32 %v877, 0.01
    %v884 = vsel %vm878, %v875, %v881
    %v885 = vsel %vm879, %v876, %v882
    %v886 = vsel %vm880, %v877, %v883
    %890 = vrot.lane.b32.xlu0 %v884, 32
    %v891 = vpop.permute.xlu0 %890
    %892 = vrot.lane.b32.xlu0 %v885, 32
    %v893 = vpop.permute.xlu0 %892
    %894 = vrot.lane.b32.xlu0 %v886, 32
    %v895 = vpop.permute.xlu0 %894
    %v899 = vmul.f32 %v864, %v891
    %v900 = vmul.f32 %v867, %v893
    %v901 = vmul.f32 %v870, %v895
    %v902 = vstv %s373
    %v903 = vmul.f32 %v902, %v772
    %v904 = vmul.f32 %v902, %v773
    %s905 = ssub.f32 1.0, %s373
    %v906 = vstv %s905
    %v907 = vmul.f32 %v906, %v829
    %v908 = vmul.f32 %v906, %v830
    %911 = vrot.lane.b32.xlu0 %v907, 96
    %v912 = vpop.permute.xlu0 %911
    %913 = vrot.lane.b32.xlu0 %v908, 96
    %v914 = vpop.permute.xlu0 %913
    %v917 = vadd.f32 %v903, %v912
    %v918 = vadd.f32 %v904, %v914
    %v919 = vstv %s374
    %v920 = vmul.f32 %v919, %v774
    %v921 = vmul.f32 %v919, %v775
    %v922 = vmul.f32 %v919, %v776
    %s923 = ssub.f32 1.0, %s374
    %v924 = vstv %s923
    %v925 = vmul.f32 %v924, %v899
    %v926 = vmul.f32 %v924, %v900
    %v927 = vmul.f32 %v924, %v901
    %931 = vrot.lane.b32.xlu0 %v925, 96
    %v932 = vpop.permute.xlu0 %931
    %933 = vrot.lane.b32.xlu0 %v926, 96
    %v934 = vpop.permute.xlu0 %933
    %935 = vrot.lane.b32.xlu0 %v927, 96
    %v936 = vpop.permute.xlu0 %935
    %v940 = vadd.f32 %v920, %v932
    %v941 = vadd.f32 %v921, %v934
    %v942 = vadd.f32 %v922, %v936
    %v944 = vsel %vm347, %v917, 0
    %v947 = vsel %vm347, %v918, 0
    %949 = vmatpush.msra.mxu0 0.0
    %950 = vmatpush.msra.mxu0 0.0
    %951 = vmatpush.msra.mxu0 0.0
    %952 = vmatpush.msra.mxu0 0.0
    %953 = vmatpush.msra.mxu0 0.0
    %954 = vmatpush.msra.mxu0 0.0
    %955 = vmatpush.msra.mxu0 0.0
    %956 = vmatpush.msra.mxu0 0.0
    %957 = vmatpush.msra.mxu0 0.0
    %958 = vmatpush.msra.mxu0 0.0
    %959 = vmatpush.msra.mxu0 0.0
    %960 = vmatpush.msra.mxu0 0.0
    %961 = vmatpush.msra.mxu0 %v306
    %962 = vmatpush.msra.mxu0 %v305
    %963 = vmatpush.msra.mxu0 %v304
    %964 = vmatpush.msra.mxu0 %v303
    %965 = vmatmul.f32.gmra.mxu0 %v944
    %v966 = vpop.f32.mrf.mxu0
    %v967 = vadd.f32 0.0, %v966
    %968 = vmatmul.f32.gmra.mxu0 %v947
    %v969 = vpop.f32.mrf.mxu0
    %v970 = vadd.f32 0.0, %v969
    %971 = vdwg.mxu0
    %v972 = vadd.f32 %v967, %v405
    %v973 = vadd.f32 %v970, %v405
    %vm974 = vcmp.ge.f32.partialorder %v972, 0.0
    %vm975 = vcmp.ge.f32.partialorder %v973, 0.0
    %v976 = vmul.f32 %v972, 0.01
    %v977 = vmul.f32 %v973, 0.01
    %v978 = vsel %vm974, %v972, %v976
    %v979 = vsel %vm975, %v973, %v977
    %982 = vrot.lane.b32.xlu0 %v978, 16
    %v983 = vpop.permute.xlu0 %982
    %984 = vrot.lane.b32.xlu0 %v979, 16
    %v985 = vpop.permute.xlu0 %984
    %v988 = vmul.f32 %v967, %v983
    %v989 = vmul.f32 %v970, %v985
    %v991 = vsel %vm347, %v940, 0
    %v994 = vsel %vm347, %v941, 0
    %v997 = vsel %vm347, %v942, 0
    %999 = vmatpush.msra.mxu0 0.0
    %1000 = vmatpush.msra.mxu0 0.0
    %1001 = vmatpush.msra.mxu0 0.0
    %1002 = vmatpush.msra.mxu0 0.0
    %1003 = vmatpush.msra.mxu0 0.0
    %1004 = vmatpush.msra.mxu0 0.0
    %1005 = vmatpush.msra.mxu0 0.0
    %1006 = vmatpush.msra.mxu0 0.0
    %1007 = vmatpush.msra.mxu0 0.0
    %1008 = vmatpush.msra.mxu0 0.0
    %1009 = vmatpush.msra.mxu0 0.0
    %1010 = vmatpush.msra.mxu0 0.0
    %1011 = vmatpush.msra.mxu0 %v334
    %1012 = vmatpush.msra.mxu0 %v333
    %1013 = vmatpush.msra.mxu0 %v332
    %1014 = vmatpush.msra.mxu0 %v331
    %1015 = vmatmul.f32.gmra.mxu0 %v991
    %v1016 = vpop.f32.mrf.mxu0
    %v1017 = vadd.f32 0.0, %v1016
    %1018 = vmatmul.f32.gmra.mxu0 %v994
    %v1019 = vpop.f32.mrf.mxu0
    %v1020 = vadd.f32 0.0, %v1019
    %1021 = vmatmul.f32.gmra.mxu0 %v997
    %v1022 = vpop.f32.mrf.mxu0
    %v1023 = vadd.f32 0.0, %v1022
    %1024 = vdwg.mxu0
    %v1025 = vadd.f32 %v1017, %v461
    %v1026 = vadd.f32 %v1020, %v461
    %v1027 = vadd.f32 %v1023, %v461
    %vm1028 = vcmp.ge.f32.partialorder %v1025, 0.0
    %vm1029 = vcmp.ge.f32.partialorder %v1026, 0.0
    %vm1030 = vcmp.ge.f32.partialorder %v1027, 0.0
    %v1031 = vmul.f32 %v1025, 0.01
    %v1032 = vmul.f32 %v1026, 0.01
    %v1033 = vmul.f32 %v1027, 0.01
    %v1034 = vsel %vm1028, %v1025, %v1031
    %v1035 = vsel %vm1029, %v1026, %v1032
    %v1036 = vsel %vm1030, %v1027, %v1033
    %1040 = vrot.lane.b32.xlu0 %v1034, 16
    %v1041 = vpop.permute.xlu0 %1040
    %1042 = vrot.lane.b32.xlu0 %v1035, 16
    %v1043 = vpop.permute.xlu0 %1042
    %1044 = vrot.lane.b32.xlu0 %v1036, 16
    %v1045 = vpop.permute.xlu0 %1044
    %v1049 = vmul.f32 %v1017, %v1041
    %v1050 = vmul.f32 %v1020, %v1043
    %v1051 = vmul.f32 %v1023, %v1045
    %v1052 = vmul.f32 %v917, %v917
    %v1053 = vmul.f32 %v918, %v918
    %v1054 = vsel %vm347, %v1052, 0.0
    %1055 = vadd.xlane.f32.xlu0 %v1054
    %v1056 = vpop.xlane.xlu0 %1055
    %v1057 = vsel %vm347, %v1053, 0.0
    %1058 = vadd.xlane.f32.xlu0 %v1057
    %v1059 = vpop.xlane.xlu0 %1058
    %v1060 = vrsqrt.pop %v1056
    %v1061 = vmul.f32 %v1060, %v1056
    %v1062 = vmul.f32 %v1061, %v1060
    %v1063 = vmul.f32 0.5, %v1062
    %v1064 = vsub.f32 1.5, %v1063
    %v1065 = vmul.f32 %v1060, %v1064
    %v1066 = vmul.f32 %v1056, %v1065
    %vm1067 = vcmp.eq.f32.partialorder %v1056, inf
    %v1068 = vsel %vm1067, %v1056, %v1066
    %vm1069 = vcmp.eq.f32.partialorder %v1056, 0.0
    %v1070 = vand.u32 %v1056, 2147483648
    %v1071 = vsel %vm1069, %v1070, %v1068
    %v1072 = vrsqrt.pop %v1059
    %v1073 = vmul.f32 %v1072, %v1059
    %v1074 = vmul.f32 %v1073, %v1072
    %v1075 = vmul.f32 0.5, %v1074
    %v1076 = vsub.f32 1.5, %v1075
    %v1077 = vmul.f32 %v1072, %v1076
    %v1078 = vmul.f32 %v1059, %v1077
    %vm1079 = vcmp.eq.f32.partialorder %v1059, inf
    %v1080 = vsel %vm1079, %v1059, %v1078
    %vm1081 = vcmp.eq.f32.partialorder %v1059, 0.0
    %v1082 = vand.u32 %v1059, 2147483648
    %v1083 = vsel %vm1081, %v1082, %v1080
    %v1084 = vmax.f32 %v1071, 1e-12
    %v1085 = vmax.f32 %v1083, 1e-12
    %v1086 = vrcp.pop %v1084
    %v1087 = vmul.f32 %v1084, %v1086
    %v1088 = vsub.f32 1.0, %v1087
    %v1089 = vmul.f32 %v1086, %v1088
    %v1090 = vadd.f32 %v1086, %v1089
    %vm1091 = vweird.f32 %v1084
    %vm1092 = vweird.f32 %v1086
    %vm1093 = vmor %vm1091, %vm1092
    %v1094 = vsel %vm1093, %v1086, %v1090
    %v1095 = vand.u32 2147483647, %v1084
    %vm1096 = vcmp.eq.f32.partialorder %v1095, 8.507059e+37
    %v1097 = vand.u32 %v1084, 2147483648
    %v1098 = vor.u32 1.1754944e-38, %v1097
    %v1099 = vsel %vm1096, %v1098, %v1094
    %v1100 = vrcp.pop %v1085
    %v1101 = vmul.f32 %v1085, %v1100
    %v1102 = vsub.f32 1.0, %v1101
    %v1103 = vmul.f32 %v1100, %v1102
    %v1104 = vadd.f32 %v1100, %v1103
    %vm1105 = vweird.f32 %v1085
    %vm1106 = vweird.f32 %v1100
    %vm1107 = vmor %vm1105, %vm1106
    %v1108 = vsel %vm1107, %v1100, %v1104
    %v1109 = vand.u32 2147483647, %v1085
    %vm1110 = vcmp.eq.f32.partialorder %v1109, 8.507059e+37
    %v1111 = vand.u32 %v1085, 2147483648
    %v1112 = vor.u32 1.1754944e-38, %v1111
    %v1113 = vsel %vm1110, %v1112, %v1108
    %v1114 = vmul.f32 %v917, %v1099
    %v1115 = vmul.f32 %v918, %v1113
    %v1116 = vadd.f32 %v368, %v1114
    %v1117 = vadd.f32 %v369, %v1115
    %v1118 = vmul.f32 %v940, %v940
    %v1119 = vmul.f32 %v941, %v941
    %v1120 = vmul.f32 %v942, %v942
    %v1121 = vsel %vm347, %v1118, 0.0
    %1122 = vadd.xlane.f32.xlu0 %v1121
    %v1123 = vpop.xlane.xlu0 %1122
    %v1124 = vsel %vm347, %v1119, 0.0
    %1125 = vadd.xlane.f32.xlu0 %v1124
    %v1126 = vpop.xlane.xlu0 %1125
    %v1127 = vsel %vm347, %v1120, 0.0
    %1128 = vadd.xlane.f32.xlu0 %v1127
    %v1129 = vpop.xlane.xlu0 %1128
    %v1130 = vrsqrt.pop %v1123
    %v1131 = vmul.f32 %v1130, %v1123
    %v1132 = vmul.f32 %v1131, %v1130
    %v1133 = vmul.f32 0.5, %v1132
    %v1134 = vsub.f32 1.5, %v1133
    %v1135 = vmul.f32 %v1130, %v1134
    %v1136 = vmul.f32 %v1123, %v1135
    %vm1137 = vcmp.eq.f32.partialorder %v1123, inf
    %v1138 = vsel %vm1137, %v1123, %v1136
    %vm1139 = vcmp.eq.f32.partialorder %v1123, 0.0
    %v1140 = vand.u32 %v1123, 2147483648
    %v1141 = vsel %vm1139, %v1140, %v1138
    %v1142 = vrsqrt.pop %v1126
    %v1143 = vmul.f32 %v1142, %v1126
    %v1144 = vmul.f32 %v1143, %v1142
    %v1145 = vmul.f32 0.5, %v1144
    %v1146 = vsub.f32 1.5, %v1145
    %v1147 = vmul.f32 %v1142, %v1146
    %v1148 = vmul.f32 %v1126, %v1147
    %vm1149 = vcmp.eq.f32.partialorder %v1126, inf
    %v1150 = vsel %vm1149, %v1126, %v1148
    %vm1151 = vcmp.eq.f32.partialorder %v1126, 0.0
    %v1152 = vand.u32 %v1126, 2147483648
    %v1153 = vsel %vm1151, %v1152, %v1150
    %v1154 = vrsqrt.pop %v1129
    %v1155 = vmul.f32 %v1154, %v1129
    %v1156 = vmul.f32 %v1155, %v1154
    %v1157 = vmul.f32 0.5, %v1156
    %v1158 = vsub.f32 1.5, %v1157
    %v1159 = vmul.f32 %v1154, %v1158
    %v1160 = vmul.f32 %v1129, %v1159
    %vm1161 = vcmp.eq.f32.partialorder %v1129, inf
    %v1162 = vsel %vm1161, %v1129, %v1160
    %vm1163 = vcmp.eq.f32.partialorder %v1129, 0.0
    %v1164 = vand.u32 %v1129, 2147483648
    %v1165 = vsel %vm1163, %v1164, %v1162
    %v1166 = vmax.f32 %v1141, 1e-12
    %v1167 = vmax.f32 %v1153, 1e-12
    %v1168 = vmax.f32 %v1165, 1e-12
    %v1169 = vrcp.pop %v1166
    %v1170 = vmul.f32 %v1166, %v1169
    %v1171 = vsub.f32 1.0, %v1170
    %v1172 = vmul.f32 %v1169, %v1171
    %v1173 = vadd.f32 %v1169, %v1172
    %vm1174 = vweird.f32 %v1166
    %vm1175 = vweird.f32 %v1169
    %vm1176 = vmor %vm1174, %vm1175
    %v1177 = vsel %vm1176, %v1169, %v1173
    %v1178 = vand.u32 2147483647, %v1166
    %vm1179 = vcmp.eq.f32.partialorder %v1178, 8.507059e+37
    %v1180 = vand.u32 %v1166, 2147483648
    %v1181 = vor.u32 1.1754944e-38, %v1180
    %v1182 = vsel %vm1179, %v1181, %v1177
    %v1183 = vrcp.pop %v1167
    %v1184 = vmul.f32 %v1167, %v1183
    %v1185 = vsub.f32 1.0, %v1184
    %v1186 = vmul.f32 %v1183, %v1185
    %v1187 = vadd.f32 %v1183, %v1186
    %vm1188 = vweird.f32 %v1167
    %vm1189 = vweird.f32 %v1183
    %vm1190 = vmor %vm1188, %vm1189
    %v1191 = vsel %vm1190, %v1183, %v1187
    %v1192 = vand.u32 2147483647, %v1167
    %vm1193 = vcmp.eq.f32.partialorder %v1192, 8.507059e+37
    %v1194 = vand.u32 %v1167, 2147483648
    %v1195 = vor.u32 1.1754944e-38, %v1194
    %v1196 = vsel %vm1193, %v1195, %v1191
    %v1197 = vrcp.pop %v1168
    %v1198 = vmul.f32 %v1168, %v1197
    %v1199 = vsub.f32 1.0, %v1198
    %v1200 = vmul.f32 %v1197, %v1199
    %v1201 = vadd.f32 %v1197, %v1200
    %vm1202 = vweird.f32 %v1168
    %vm1203 = vweird.f32 %v1197
    %vm1204 = vmor %vm1202, %vm1203
    %v1205 = vsel %vm1204, %v1197, %v1201
    %v1206 = vand.u32 2147483647, %v1168
    %vm1207 = vcmp.eq.f32.partialorder %v1206, 8.507059e+37
    %v1208 = vand.u32 %v1168, 2147483648
    %v1209 = vor.u32 1.1754944e-38, %v1208
    %v1210 = vsel %vm1207, %v1209, %v1205
    %v1211 = vmul.f32 %v940, %v1182
    %v1212 = vmul.f32 %v941, %v1196
    %v1213 = vmul.f32 %v942, %v1210
    %v1214 = vadd.f32 %v370, %v1211
    %v1215 = vadd.f32 %v371, %v1212
    %v1216 = vadd.f32 %v372, %v1213
    %v1217 = vmul.f32 %v491, %v988
    %v1218 = vmul.f32 %v491, %v989
    %v1219 = vmul.f32 %v147, %v988
    %v1220 = vmul.f32 %v148, %v989
    %1223 = vrot.lane.b32.xlu0 %v1219, 112
    %v1224 = vpop.permute.xlu0 %1223
    %1225 = vrot.lane.b32.xlu0 %v1220, 112
    %v1226 = vpop.permute.xlu0 %1225
    %1229 = vmatpush.msra.mxu0 0.0
    %1230 = vmatpush.msra.mxu0 0.0
    %1231 = vmatpush.msra.mxu0 0.0
    %1232 = vmatpush.msra.mxu0 0.0
    %1233 = vmatpush.msra.mxu0 0.0
    %1234 = vmatpush.msra.mxu0 0.0
    %1235 = vmatpush.msra.mxu0 0.0
    %1236 = vmatpush.msra.mxu0 0.0
    %1237 = vmatpush.msra.mxu0 0.0
    %1238 = vmatpush.msra.mxu0 0.0
    %1239 = vmatpush.msra.mxu0 0.0
    %1240 = vmatpush.msra.mxu0 0.0
    %1241 = vmatpush.msra.mxu0 0.0
    %1242 = vmatpush.msra.mxu0 0.0
    %1243 = vmatpush.msra.mxu0 %v1226
    %1244 = vmatpush.msra.mxu0 %v1224
    %1245 = vmatmul.f32.gmra.mxu0 %v505
    %v1246 = vpop.f32.mrf.mxu0
    %v1247 = vadd.f32 0.0, %v1246
    %1248 = vmatmul.f32.gmra.mxu0 %v508
    %v1249 = vpop.f32.mrf.mxu0
    %v1250 = vadd.f32 0.0, %v1249
    %1251 = vdwg.mxu0
    %v1252 = vmul.f32 %v147, %v1247
    %v1253 = vmul.f32 %v148, %v1250
    %v1254 = vmul.f32 %v536, %v1252
    %v1255 = vmul.f32 %v536, %v1253
    %1258 = vrot.lane.b32.xlu0 %v1254, 16
    %v1259 = vpop.permute.xlu0 %1258
    %1260 = vrot.lane.b32.xlu0 %v1255, 16
    %v1261 = vpop.permute.xlu0 %1260
    %v1264 = vadd.f32 %v1217, %v1259
    %v1265 = vadd.f32 %v1218, %v1261
    %v1266 = vmul.f32 %v147, %v1252
    %v1267 = vmul.f32 %v148, %v1253
    %1268 = vmatpush.msra.mxu0 0.0
    %1269 = vmatpush.msra.mxu0 0.0
    %1270 = vmatpush.msra.mxu0 0.0
    %1271 = vmatpush.msra.mxu0 0.0
    %1272 = vmatpush.msra.mxu0 0.0
    %1273 = vmatpush.msra.mxu0 0.0
    %1274 = vmatpush.msra.mxu0 0.0
    %1275 = vmatpush.msra.mxu0 0.0
    %1276 = vmatpush.msra.mxu0 0.0
    %1277 = vmatpush.msra.mxu0 0.0
    %1278 = vmatpush.msra.mxu0 0.0
    %1279 = vmatpush.msra.mxu0 0.0
    %1280 = vmatpush.msra.mxu0 0.0
    %1281 = vmatpush.msra.mxu0 0.0
    %1282 = vmatpush.msra.mxu0 %v1267
    %1283 = vmatpush.msra.mxu0 %v1266
    %1284 = vmatmul.f32.gmra.mxu0 %v505
    %v1285 = vpop.f32.mrf.mxu0
    %v1286 = vadd.f32 0.0, %v1285
    %1287 = vmatmul.f32.gmra.mxu0 %v508
    %v1288 = vpop.f32.mrf.mxu0
    %v1289 = vadd.f32 0.0, %v1288
    %1290 = vdwg.mxu0
    %v1291 = vmul.f32 %v147, %v1286
    %v1292 = vmul.f32 %v148, %v1289
    %v1293 = vmul.f32 %v577, %v1291
    %v1294 = vmul.f32 %v577, %v1292
    %1297 = vrot.lane.b32.xlu0 %v1293, 16
    %v1298 = vpop.permute.xlu0 %1297
    %1299 = vrot.lane.b32.xlu0 %v1294, 16
    %v1300 = vpop.permute.xlu0 %1299
    %v1303 = vadd.f32 %v1264, %v1298
    %v1304 = vadd.f32 %v1265, %v1300
    %v1305 = vmul.f32 %v591, %v1049
    %v1306 = vmul.f32 %v591, %v1050
    %v1307 = vmul.f32 %v591, %v1051
    %v1308 = vmul.f32 %v195, %v1049
    %v1309 = vmul.f32 %v196, %v1050
    %v1310 = vmul.f32 %v197, %v1051
    %1314 = vrot.lane.b32.xlu0 %v1308, 112
    %v1315 = vpop.permute.xlu0 %1314
    %1316 = vrot.lane.b32.xlu0 %v1309, 112
    %v1317 = vpop.permute.xlu0 %1316
    %1318 = vrot.lane.b32.xlu0 %v1310, 112
    %v1319 = vpop.permute.xlu0 %1318
    %1323 = vmatpush.msra.mxu0 0.0
    %1324 = vmatpush.msra.mxu0 0.0
    %1325 = vmatpush.msra.mxu0 0.0
    %1326 = vmatpush.msra.mxu0 0.0
    %1327 = vmatpush.msra.mxu0 0.0
    %1328 = vmatpush.msra.mxu0 0.0
    %1329 = vmatpush.msra.mxu0 0.0
    %1330 = vmatpush.msra.mxu0 0.0
    %1331 = vmatpush.msra.mxu0 0.0
    %1332 = vmatpush.msra.mxu0 0.0
    %1333 = vmatpush.msra.mxu0 0.0
    %1334 = vmatpush.msra.mxu0 0.0
    %1335 = vmatpush.msra.mxu0 0.0
    %1336 = vmatpush.msra.mxu0 %v1319
    %1337 = vmatpush.msra.mxu0 %v1317
    %1338 = vmatpush.msra.mxu0 %v1315
    %1339 = vmatmul.f32.gmra.mxu0 %v611
    %v1340 = vpop.f32.mrf.mxu0
    %v1341 = vadd.f32 0.0, %v1340
    %1342 = vmatmul.f32.gmra.mxu0 %v614
    %v1343 = vpop.f32.mrf.mxu0
    %v1344 = vadd.f32 0.0, %v1343
    %1345 = vmatmul.f32.gmra.mxu0 %v617
    %v1346 = vpop.f32.mrf.mxu0
    %v1347 = vadd.f32 0.0, %v1346
    %1348 = vdwg.mxu0
    %v1349 = vmul.f32 %v195, %v1341
    %v1350 = vmul.f32 %v196, %v1344
    %v1351 = vmul.f32 %v197, %v1347
    %v1352 = vmul.f32 %v649, %v1349
    %v1353 = vmul.f32 %v649, %v1350
    %v1354 = vmul.f32 %v649, %v1351
    %1358 = vrot.lane.b32.xlu0 %v1352, 16
    %v1359 = vpop.permute.xlu0 %1358
    %1360 = vrot.lane.b32.xlu0 %v1353, 16
    %v1361 = vpop.permute.xlu0 %1360
    %1362 = vrot.lane.b32.xlu0 %v1354, 16
    %v1363 = vpop.permute.xlu0 %1362
    %v1367 = vadd.f32 %v1305, %v1359
    %v1368 = vadd.f32 %v1306, %v1361
    %v1369 = vadd.f32 %v1307, %v1363
    %v1370 = vmul.f32 %v195, %v1349
    %v1371 = vmul.f32 %v196, %v1350
    %v1372 = vmul.f32 %v197, %v1351
    %1373 = vmatpush.msra.mxu0 0.0
    %1374 = vmatpush.msra.mxu0 0.0
    %1375 = vmatpush.msra.mxu0 0.0
    %1376 = vmatpush.msra.mxu0 0.0
    %1377 = vmatpush.msra.mxu0 0.0
    %1378 = vmatpush.msra.mxu0 0.0
    %1379 = vmatpush.msra.mxu0 0.0
    %1380 = vmatpush.msra.mxu0 0.0
    %1381 = vmatpush.msra.mxu0 0.0
    %1382 = vmatpush.msra.mxu0 0.0
    %1383 = vmatpush.msra.mxu0 0.0
    %1384 = vmatpush.msra.mxu0 0.0
    %1385 = vmatpush.msra.mxu0 0.0
    %1386 = vmatpush.msra.mxu0 %v1372
    %1387 = vmatpush.msra.mxu0 %v1371
    %1388 = vmatpush.msra.mxu0 %v1370
    %1389 = vmatmul.f32.gmra.mxu0 %v611
    %v1390 = vpop.f32.mrf.mxu0
    %v1391 = vadd.f32 0.0, %v1390
    %1392 = vmatmul.f32.gmra.mxu0 %v614
    %v1393 = vpop.f32.mrf.mxu0
    %v1394 = vadd.f32 0.0, %v1393
    %1395 = vmatmul.f32.gmra.mxu0 %v617
    %v1396 = vpop.f32.mrf.mxu0
    %v1397 = vadd.f32 0.0, %v1396
    %1398 = vdwg.mxu0
    %v1399 = vmul.f32 %v195, %v1391
    %v1400 = vmul.f32 %v196, %v1394
    %v1401 = vmul.f32 %v197, %v1397
    %v1402 = vmul.f32 %v701, %v1399
    %v1403 = vmul.f32 %v701, %v1400
    %v1404 = vmul.f32 %v701, %v1401
    %1408 = vrot.lane.b32.xlu0 %v1402, 16
    %v1409 = vpop.permute.xlu0 %1408
    %1410 = vrot.lane.b32.xlu0 %v1403, 16
    %v1411 = vpop.permute.xlu0 %1410
    %1412 = vrot.lane.b32.xlu0 %v1404, 16
    %v1413 = vpop.permute.xlu0 %1412
    %v1417 = vadd.f32 %v1367, %v1409
    %v1418 = vadd.f32 %v1368, %v1411
    %v1419 = vadd.f32 %v1369, %v1413
    %v1420 = vmul.f32 %v274, %v917
    %v1421 = vmul.f32 %v275, %v918
    %v1422 = vmul.f32 %v276, %v940
    %v1423 = vmul.f32 %v277, %v941
    %v1424 = vmul.f32 %v278, %v942
    %1425 = vmatpush.msra.mxu0 0.0
    %1426 = vmatpush.msra.mxu0 0.0
    %1427 = vmatpush.msra.mxu0 0.0
    %1428 = vmatpush.msra.mxu0 0.0
    %1429 = vmatpush.msra.mxu0 0.0
    %1430 = vmatpush.msra.mxu0 0.0
    %1431 = vmatpush.msra.mxu0 0.0
    %1432 = vmatpush.msra.mxu0 0.0
    %1433 = vmatpush.msra.mxu0 0.0
    %1434 = vmatpush.msra.mxu0 0.0
    %1435 = vmatpush.msra.mxu0 0.0
    %1436 = vmatpush.msra.mxu0 %v1424
    %1437 = vmatpush.msra.mxu0 %v1423
    %1438 = vmatpush.msra.mxu0 %v1422
    %1439 = vmatpush.msra.mxu0 %v1421
    %1440 = vmatpush.msra.mxu0 %v1420
    %1441 = vmatmul.f32.gmra.mxu0 %v726
    %v1442 = vpop.f32.mrf.mxu0
    %v1443 = vadd.f32 0.0, %v1442
    %1444 = vmatmul.f32.gmra.mxu0 %v729
    %v1445 = vpop.f32.mrf.mxu0
    %v1446 = vadd.f32 0.0, %v1445
    %1447 = vmatmul.f32.gmra.mxu0 %v732
    %v1448 = vpop.f32.mrf.mxu0
    %v1449 = vadd.f32 0.0, %v1448
    %1450 = vmatmul.f32.gmra.mxu0 %v735
    %v1451 = vpop.f32.mrf.mxu0
    %v1452 = vadd.f32 0.0, %v1451
    %1453 = vmatmul.f32.gmra.mxu0 %v738
    %v1454 = vpop.f32.mrf.mxu0
    %v1455 = vadd.f32 0.0, %v1454
    %1456 = vdwg.mxu0
    %v1457 = vmul.f32 %v274, %v1443
    %v1458 = vmul.f32 %v275, %v1446
    %v1459 = vmul.f32 %v276, %v1449
    %v1460 = vmul.f32 %v277, %v1452
    %v1461 = vmul.f32 %v278, %v1455
    %1464 = vrot.lane.b32.xlu0 %v1303, 112
    %v1465 = vpop.permute.xlu0 %1464
    %1466 = vrot.lane.b32.xlu0 %v1304, 112
    %v1467 = vpop.permute.xlu0 %1466
    %v1468 = vsel %vm116, %v1465, 0
    %v1470 = vsel %vm116, %v1467, 0
    %1472 = vmatpush.msra.mxu0 0.0
    %1473 = vmatpush.msra.mxu0 0.0
    %1474 = vmatpush.msra.mxu0 0.0
    %1475 = vmatpush.msra.mxu0 0.0
    %1476 = vmatpush.msra.mxu0 0.0
    %1477 = vmatpush.msra.mxu0 0.0
    %1478 = vmatpush.msra.mxu0 0.0
    %1479 = vmatpush.msra.mxu0 0.0
    %1480 = vmatpush.msra.mxu0 0.0
    %1481 = vmatpush.msra.mxu0 0.0
    %1482 = vmatpush.msra.mxu0 0.0
    %1483 = vmatpush.msra.mxu0 0.0
    %1484 = vmatpush.msra.mxu0 0.0
    %1485 = vmatpush.msra.mxu0 0.0
    %1486 = vmatpush.msra.mxu0 %v349
    %1487 = vmatpush.msra.mxu0 %v348
    %1488 = vmatmul.f32.gmra.mxu0 %v1468
    %v1489 = vpop.f32.mrf.mxu0
    %v1490 = vadd.f32 0.0, %v1489
    %1491 = vmatmul.f32.gmra.mxu0 %v1470
    %v1492 = vpop.f32.mrf.mxu0
    %v1493 = vadd.f32 0.0, %v1492
    %1494 = vdwg.mxu0
    %v1495 = vadd.f32 %v1490, %v811
    %v1496 = vadd.f32 %v1493, %v811
    %vm1497 = vcmp.ge.f32.partialorder %v1495, 0.0
    %vm1498 = vcmp.ge.f32.partialorder %v1496, 0.0
    %v1499 = vmul.f32 %v1495, 0.01
    %v1500 = vmul.f32 %v1496, 0.01
    %v1501 = vsel %vm1497, %v1495, %v1499
    %v1502 = vsel %vm1498, %v1496, %v1500
    %1505 = vrot.lane.b32.xlu0 %v1501, 32
    %v1506 = vpop.permute.xlu0 %1505
    %1507 = vrot.lane.b32.xlu0 %v1502, 32
    %v1508 = vpop.permute.xlu0 %1507
    %v1511 = vmul.f32 %v1490, %v1506
    %v1512 = vmul.f32 %v1493, %v1508
    %1516 = vrot.lane.b32.xlu0 %v1417, 112
    %v1517 = vpop.permute.xlu0 %1516
    %1518 = vrot.lane.b32.xlu0 %v1418, 112
    %v1519 = vpop.permute.xlu0 %1518
    %1520 = vrot.lane.b32.xlu0 %v1419, 112
    %v1521 = vpop.permute.xlu0 %1520
    %v1522 = vsel %vm116, %v1517, 0
    %v1524 = vsel %vm116, %v1519, 0
    %v1526 = vsel %vm116, %v1521, 0
    %1528 = vmatpush.msra.mxu0 0.0
    %1529 = vmatpush.msra.mxu0 0.0
    %1530 = vmatpush.msra.mxu0 0.0
    %1531 = vmatpush.msra.mxu0 0.0
    %1532 = vmatpush.msra.mxu0 0.0
    %1533 = vmatpush.msra.mxu0 0.0
    %1534 = vmatpush.msra.mxu0 0.0
    %1535 = vmatpush.msra.mxu0 0.0
    %1536 = vmatpush.msra.mxu0 0.0
    %1537 = vmatpush.msra.mxu0 0.0
    %1538 = vmatpush.msra.mxu0 0.0
    %1539 = vmatpush.msra.mxu0 0.0
    %1540 = vmatpush.msra.mxu0 0.0
    %1541 = vmatpush.msra.mxu0 0.0
    %1542 = vmatpush.msra.mxu0 %v363
    %1543 = vmatpush.msra.mxu0 %v362
    %1544 = vmatmul.f32.gmra.mxu0 %v1522
    %v1545 = vpop.f32.mrf.mxu0
    %v1546 = vadd.f32 0.0, %v1545
    %1547 = vmatmul.f32.gmra.mxu0 %v1524
    %v1548 = vpop.f32.mrf.mxu0
    %v1549 = vadd.f32 0.0, %v1548
    %1550 = vmatmul.f32.gmra.mxu0 %v1526
    %v1551 = vpop.f32.mrf.mxu0
    %v1552 = vadd.f32 0.0, %v1551
    %1553 = vdwg.mxu0
    %v1554 = vadd.f32 %v1546, %v873
    %v1555 = vadd.f32 %v1549, %v873
    %v1556 = vadd.f32 %v1552, %v873
    %vm1557 = vcmp.ge.f32.partialorder %v1554, 0.0
    %vm1558 = vcmp.ge.f32.partialorder %v1555, 0.0
    %vm1559 = vcmp.ge.f32.partialorder %v1556, 0.0
    %v1560 = vmul.f32 %v1554, 0.01
    %v1561 = vmul.f32 %v1555, 0.01
    %v1562 = vmul.f32 %v1556, 0.01
    %v1563 = vsel %vm1557, %v1554, %v1560
    %v1564 = vsel %vm1558, %v1555, %v1561
    %v1565 = vsel %vm1559, %v1556, %v1562
    %1569 = vrot.lane.b32.xlu0 %v1563, 32
    %v1570 = vpop.permute.xlu0 %1569
    %1571 = vrot.lane.b32.xlu0 %v1564, 32
    %v1572 = vpop.permute.xlu0 %1571
    %1573 = vrot.lane.b32.xlu0 %v1565, 32
    %v1574 = vpop.permute.xlu0 %1573
    %v1578 = vmul.f32 %v1546, %v1570
    %v1579 = vmul.f32 %v1549, %v1572
    %v1580 = vmul.f32 %v1552, %v1574
    %v1581 = vmul.f32 %v902, %v1457
    %v1582 = vmul.f32 %v902, %v1458
    %v1583 = vmul.f32 %v906, %v1511
    %v1584 = vmul.f32 %v906, %v1512
    %1587 = vrot.lane.b32.xlu0 %v1583, 96
    %v1588 = vpop.permute.xlu0 %1587
    %1589 = vrot.lane.b32.xlu0 %v1584, 96
    %v1590 = vpop.permute.xlu0 %1589
    %v1593 = vadd.f32 %v1581, %v1588
    %v1594 = vadd.f32 %v1582, %v1590
    %v1595 = vmul.f32 %v919, %v1459
    %v1596 = vmul.f32 %v919, %v1460
    %v1597 = vmul.f32 %v919, %v1461
    %v1598 = vmul.f32 %v924, %v1578
    %v1599 = vmul.f32 %v924, %v1579
    %v1600 = vmul.f32 %v924, %v1580
    %1604 = vrot.lane.b32.xlu0 %v1598, 96
    %v1605 = vpop.permute.xlu0 %1604
    %1606 = vrot.lane.b32.xlu0 %v1599, 96
    %v1607 = vpop.permute.xlu0 %1606
    %1608 = vrot.lane.b32.xlu0 %v1600, 96
    %v1609 = vpop.permute.xlu0 %1608
    %v1613 = vadd.f32 %v1595, %v1605
    %v1614 = vadd.f32 %v1596, %v1607
    %v1615 = vadd.f32 %v1597, %v1609
    %v1616 = vmul.f32 %v1593, %v1593
    %v1617 = vmul.f32 %v1594, %v1594
    %v1618 = vsel %vm347, %v1616, 0.0
    %1619 = vadd.xlane.f32.xlu0 %v1618
    %v1620 = vpop.xlane.xlu0 %1619
    %v1621 = vsel %vm347, %v1617, 0.0
    %1622 = vadd.xlane.f32.xlu0 %v1621
    %v1623 = vpop.xlane.xlu0 %1622
    %v1624 = vrsqrt.pop %v1620
    %v1625 = vmul.f32 %v1624, %v1620
    %v1626 = vmul.f32 %v1625, %v1624
    %v1627 = vmul.f32 0.5, %v1626
    %v1628 = vsub.f32 1.5, %v1627
    %v1629 = vmul.f32 %v1624, %v1628
    %v1630 = vmul.f32 %v1620, %v1629
    %vm1631 = vcmp.eq.f32.partialorder %v1620, inf
    %v1632 = vsel %vm1631, %v1620, %v1630
    %vm1633 = vcmp.eq.f32.partialorder %v1620, 0.0
    %v1634 = vand.u32 %v1620, 2147483648
    %v1635 = vsel %vm1633, %v1634, %v1632
    %v1636 = vrsqrt.pop %v1623
    %v1637 = vmul.f32 %v1636, %v1623
    %v1638 = vmul.f32 %v1637, %v1636
    %v1639 = vmul.f32 0.5, %v1638
    %v1640 = vsub.f32 1.5, %v1639
    %v1641 = vmul.f32 %v1636, %v1640
    %v1642 = vmul.f32 %v1623, %v1641
    %vm1643 = vcmp.eq.f32.partialorder %v1623, inf
    %v1644 = vsel %vm1643, %v1623, %v1642
    %vm1645 = vcmp.eq.f32.partialorder %v1623, 0.0
    %v1646 = vand.u32 %v1623, 2147483648
    %v1647 = vsel %vm1645, %v1646, %v1644
    %v1648 = vmax.f32 %v1635, 1e-12
    %v1649 = vmax.f32 %v1647, 1e-12
    %v1650 = vrcp.pop %v1648
    %v1651 = vmul.f32 %v1648, %v1650
    %v1652 = vsub.f32 1.0, %v1651
    %v1653 = vmul.f32 %v1650, %v1652
    %v1654 = vadd.f32 %v1650, %v1653
    %vm1655 = vweird.f32 %v1648
    %vm1656 = vweird.f32 %v1650
    %vm1657 = vmor %vm1655, %vm1656
    %v1658 = vsel %vm1657, %v1650, %v1654
    %v1659 = vand.u32 2147483647, %v1648
    %vm1660 = vcmp.eq.f32.partialorder %v1659, 8.507059e+37
    %v1661 = vand.u32 %v1648, 2147483648
    %v1662 = vor.u32 1.1754944e-38, %v1661
    %v1663 = vsel %vm1660, %v1662, %v1658
    %v1664 = vrcp.pop %v1649
    %v1665 = vmul.f32 %v1649, %v1664
    %v1666 = vsub.f32 1.0, %v1665
    %v1667 = vmul.f32 %v1664, %v1666
    %v1668 = vadd.f32 %v1664, %v1667
    %vm1669 = vweird.f32 %v1649
    %vm1670 = vweird.f32 %v1664
    %vm1671 = vmor %vm1669, %vm1670
    %v1672 = vsel %vm1671, %v1664, %v1668
    %v1673 = vand.u32 2147483647, %v1649
    %vm1674 = vcmp.eq.f32.partialorder %v1673, 8.507059e+37
    %v1675 = vand.u32 %v1649, 2147483648
    %v1676 = vor.u32 1.1754944e-38, %v1675
    %v1677 = vsel %vm1674, %v1676, %v1672
    %v1678 = vmul.f32 %v1593, %v1663
    %v1679 = vmul.f32 %v1594, %v1677
    %v1680 = vadd.f32 %v1116, %v1678
    %v1681 = vadd.f32 %v1117, %v1679
    %v1682 = vmul.f32 %v1613, %v1613
    %v1683 = vmul.f32 %v1614, %v1614
    %v1684 = vmul.f32 %v1615, %v1615
    %v1685 = vsel %vm347, %v1682, 0.0
    %1686 = vadd.xlane.f32.xlu0 %v1685
    %v1687 = vpop.xlane.xlu0 %1686
    %v1688 = vsel %vm347, %v1683, 0.0
    %1689 = vadd.xlane.f32.xlu0 %v1688
    %v1690 = vpop.xlane.xlu0 %1689
    %v1691 = vsel %vm347, %v1684, 0.0
    %1692 = vadd.xlane.f32.xlu0 %v1691
    %v1693 = vpop.xlane.xlu0 %1692
    %v1694 = vrsqrt.pop %v1687
    %v1695 = vmul.f32 %v1694, %v1687
    %v1696 = vmul.f32 %v1695, %v1694
    %v1697 = vmul.f32 0.5, %v1696
    %v1698 = vsub.f32 1.5, %v1697
    %v1699 = vmul.f32 %v1694, %v1698
    %v1700 = vmul.f32 %v1687, %v1699
    %vm1701 = vcmp.eq.f32.partialorder %v1687, inf
    %v1702 = vsel %vm1701, %v1687, %v1700
    %vm1703 = vcmp.eq.f32.partialorder %v1687, 0.0
    %v1704 = vand.u32 %v1687, 2147483648
    %v1705 = vsel %vm1703, %v1704, %v1702
    %v1706 = vrsqrt.pop %v1690
    %v1707 = vmul.f32 %v1706, %v1690
    %v1708 = vmul.f32 %v1707, %v1706
    %v1709 = vmul.f32 0.5, %v1708
    %v1710 = vsub.f32 1.5, %v1709
    %v1711 = vmul.f32 %v1706, %v1710
    %v1712 = vmul.f32 %v1690, %v1711
    %vm1713 = vcmp.eq.f32.partialorder %v1690, inf
    %v1714 = vsel %vm1713, %v1690, %v1712
    %vm1715 = vcmp.eq.f32.partialorder %v1690, 0.0
    %v1716 = vand.u32 %v1690, 2147483648
    %v1717 = vsel %vm1715, %v1716, %v1714
    %v1718 = vrsqrt.pop %v1693
    %v1719 = vmul.f32 %v1718, %v1693
    %v1720 = vmul.f32 %v1719, %v1718
    %v1721 = vmul.f32 0.5, %v1720
    %v1722 = vsub.f32 1.5, %v1721
    %v1723 = vmul.f32 %v1718, %v1722
    %v1724 = vmul.f32 %v1693, %v1723
    %vm1725 = vcmp.eq.f32.partialorder %v1693, inf
    %v1726 = vsel %vm1725, %v1693, %v1724
    %vm1727 = vcmp.eq.f32.partialorder %v1693, 0.0
    %v1728 = vand.u32 %v1693, 2147483648
    %v1729 = vsel %vm1727, %v1728, %v1726
    %v1730 = vmax.f32 %v1705, 1e-12
    %v1731 = vmax.f32 %v1717, 1e-12
    %v1732 = vmax.f32 %v1729, 1e-12
    %v1733 = vrcp.pop %v1730
    %v1734 = vmul.f32 %v1730, %v1733
    %v1735 = vsub.f32 1.0, %v1734
    %v1736 = vmul.f32 %v1733, %v1735
    %v1737 = vadd.f32 %v1733, %v1736
    %vm1738 = vweird.f32 %v1730
    %vm1739 = vweird.f32 %v1733
    %vm1740 = vmor %vm1738, %vm1739
    %v1741 = vsel %vm1740, %v1733, %v1737
    %v1742 = vand.u32 2147483647, %v1730
    %vm1743 = vcmp.eq.f32.partialorder %v1742, 8.507059e+37
    %v1744 = vand.u32 %v1730, 2147483648
    %v1745 = vor.u32 1.1754944e-38, %v1744
    %v1746 = vsel %vm1743, %v1745, %v1741
    %v1747 = vrcp.pop %v1731
    %v1748 = vmul.f32 %v1731, %v1747
    %v1749 = vsub.f32 1.0, %v1748
    %v1750 = vmul.f32 %v1747, %v1749
    %v1751 = vadd.f32 %v1747, %v1750
    %vm1752 = vweird.f32 %v1731
    %vm1753 = vweird.f32 %v1747
    %vm1754 = vmor %vm1752, %vm1753
    %v1755 = vsel %vm1754, %v1747, %v1751
    %v1756 = vand.u32 2147483647, %v1731
    %vm1757 = vcmp.eq.f32.partialorder %v1756, 8.507059e+37
    %v1758 = vand.u32 %v1731, 2147483648
    %v1759 = vor.u32 1.1754944e-38, %v1758
    %v1760 = vsel %vm1757, %v1759, %v1755
    %v1761 = vrcp.pop %v1732
    %v1762 = vmul.f32 %v1732, %v1761
    %v1763 = vsub.f32 1.0, %v1762
    %v1764 = vmul.f32 %v1761, %v1763
    %v1765 = vadd.f32 %v1761, %v1764
    %vm1766 = vweird.f32 %v1732
    %vm1767 = vweird.f32 %v1761
    %vm1768 = vmor %vm1766, %vm1767
    %v1769 = vsel %vm1768, %v1761, %v1765
    %v1770 = vand.u32 2147483647, %v1732
    %vm1771 = vcmp.eq.f32.partialorder %v1770, 8.507059e+37
    %v1772 = vand.u32 %v1732, 2147483648
    %v1773 = vor.u32 1.1754944e-38, %v1772
    %v1774 = vsel %vm1771, %v1773, %v1769
    %v1775 = vmul.f32 %v1613, %v1746
    %v1776 = vmul.f32 %v1614, %v1760
    %v1777 = vmul.f32 %v1615, %v1774
    %v1778 = vadd.f32 %v1214, %v1775
    %v1779 = vadd.f32 %v1215, %v1776
    %v1780 = vadd.f32 %v1216, %v1777
    %v1781 = vmul.f32 %v1680, 0.33333334
    %v1782 = vmul.f32 %v1681, 0.33333334
    %1783 = vst.msk [vmem:[#allocation8] sm:$0xff] %vm347, %v1781
    %1784 = vst.msk [vmem:[#allocation8 + $0x8] sm:$0xff] %vm347, %v1782
    %v1785 = vmul.f32 %v1778, 0.33333334
    %v1786 = vmul.f32 %v1779, 0.33333334
    %v1787 = vmul.f32 %v1780, 0.33333334
    %1788 = vst.msk [vmem:[#allocation9] sm:$0xff] %vm347, %v1785
    %1789 = vst.msk [vmem:[#allocation9 + $0x8] sm:$0xff] %vm347, %v1786
    %1790 = vst.msk [vmem:[#allocation9 + $0x10] sm:$0xff] %vm347, %v1787
    %v1791 = vmul.f32 %v303, %v303
    %v1792 = vmul.f32 %v304, %v304
    %v1793 = vmul.f32 %v305, %v305
    %v1794 = vmul.f32 %v306, %v306
    %v1795 = vsel %vm347, %v1791, 0.0
    %1796 = vadd.xlane.f32.xlu0 %v1795
    %v1797 = vpop.xlane.xlu0 %1796
    %v1798 = vsel %vm347, %v1792, 0.0
    %1799 = vadd.xlane.f32.xlu0 %v1798
    %v1800 = vpop.xlane.xlu0 %1799
    %v1801 = vsel %vm347, %v1793, 0.0
    %1802 = vadd.xlane.f32.xlu0 %v1801
    %v1803 = vpop.xlane.xlu0 %1802
    %v1804 = vsel %vm347, %v1794, 0.0
    %1805 = vadd.xlane.f32.xlu0 %v1804
    %v1806 = vpop.xlane.xlu0 %1805
    %v1807 = vadd.f32 %v1797, %v1800
    %v1808 = vadd.f32 %v1807, %v1803
    %v1809 = vadd.f32 %v1808, %v1806
    %v1810 = vrot.slane %v1809, 4
    %v1811 = vadd.f32 %v1809, %v1810
    %v1812 = vrot.slane %v1811, 2
    %v1813 = vadd.f32 %v1811, %v1812
    %v1814 = vrot.slane %v1813, 1
    %v1815 = vadd.f32 %v1813, %v1814
    %v1816 = vmul.f32 %v331, %v331
    %v1817 = vmul.f32 %v332, %v332
    %v1818 = vmul.f32 %v333, %v333
    %v1819 = vmul.f32 %v334, %v334
    %v1820 = vsel %vm347, %v1816, 0.0
    %1821 = vadd.xlane.f32.xlu0 %v1820
    %v1822 = vpop.xlane.xlu0 %1821
    %v1823 = vsel %vm347, %v1817, 0.0
    %1824 = vadd.xlane.f32.xlu0 %v1823
    %v1825 = vpop.xlane.xlu0 %1824
    %v1826 = vsel %vm347, %v1818, 0.0
    %1827 = vadd.xlane.f32.xlu0 %v1826
    %v1828 = vpop.xlane.xlu0 %1827
    %v1829 = vsel %vm347, %v1819, 0.0
    %1830 = vadd.xlane.f32.xlu0 %v1829
    %v1831 = vpop.xlane.xlu0 %1830
    %v1832 = vadd.f32 %v1822, %v1825
    %v1833 = vadd.f32 %v1832, %v1828
    %v1834 = vadd.f32 %v1833, %v1831
    %v1835 = vrot.slane %v1834, 4
    %v1836 = vadd.f32 %v1834, %v1835
    %v1837 = vrot.slane %v1836, 2
    %v1838 = vadd.f32 %v1836, %v1837
    %v1839 = vrot.slane %v1838, 1
    %v1840 = vadd.f32 %v1838, %v1839
    %v1841 = vadd.f32 %v1815, %v1840
    %v1842 = vmul.f32 %v348, %v348
    %v1843 = vmul.f32 %v349, %v349
    %vm1844 = vcmask 523264
    %v1845 = vsel %vm1844, %v1842, 0.0
    %1846 = vadd.xlane.f32.xlu0 %v1845
    %v1847 = vpop.xlane.xlu0 %1846
    %v1848 = vsel %vm1844, %v1843, 0.0
    %1849 = vadd.xlane.f32.xlu0 %v1848
    %v1850 = vpop.xlane.xlu0 %1849
    %v1851 = vadd.f32 %v1847, %v1850
    %v1852 = vrot.slane %v1851, 4
    %v1853 = vadd.f32 %v1851, %v1852
    %v1854 = vrot.slane %v1853, 2
    %v1855 = vadd.f32 %v1853, %v1854
    %v1856 = vrot.slane %v1855, 1
    %v1857 = vadd.f32 %v1855, %v1856
    %v1858 = vadd.f32 %v1841, %v1857
    %v1859 = vmul.f32 %v362, %v362
    %v1860 = vmul.f32 %v363, %v363
    %v1861 = vsel %vm1844, %v1859, 0.0
    %1862 = vadd.xlane.f32.xlu0 %v1861
    %v1863 = vpop.xlane.xlu0 %1862
    %v1864 = vsel %vm1844, %v1860, 0.0
    %1865 = vadd.xlane.f32.xlu0 %v1864
    %v1866 = vpop.xlane.xlu0 %1865
    %v1867 = vadd.f32 %v1863, %v1866
    %v1868 = vrot.slane %v1867, 4
    %v1869 = vadd.f32 %v1867, %v1868
    %v1870 = vrot.slane %v1869, 2
    %v1871 = vadd.f32 %v1869, %v1870
    %v1872 = vrot.slane %v1871, 1
    %v1873 = vadd.f32 %v1871, %v1872
    %v1874 = vadd.f32 %v1858, %v1873
    %v1875 = vmul.f32 %v1874, 0.5
    %vm1876 = vcmask 0
    %1877 = vst.msk [vmem:[#allocation11] sm:$0x1] %vm1876, %v1875
    // Predicated region
    $region94: #{model_forward.1} parent=1 // pred_check
      _
    $region95: #{model_forward.1} parent=1 // pred_check_branch
      %1879 = sbr.rel (0) target = $region97
    $region96: #{model_forward.1} parent=1 // pred_region
      %1881 = vsyncadd [#allocation3], 0
      %s1882 = sshll.u32 [#allocation8], 4
      %s1883 = int_to_ptr.vmem [resolvable:$true] %s1882
      %s1884 = sshll.u32 %s20, 4
      %s1885 = int_to_ptr.hbm [resolvable:$true] %s1884
      %1890 = dma.vmem_to_hbm [thread:$0]  %s1883, 256, %s1885, [#allocation3], 128, 128, 8
    $region97: #{model_forward.1} parent=1 // pred_fallthru
      _
    // Predicated region
    $region98: #{model_forward.1} parent=1 // pred_check
      _
    $region99: #{model_forward.1} parent=1 // pred_check_branch
      %1892 = sbr.rel (0) target = $region101
    $region100: #{model_forward.1} parent=1 // pred_region
      %1894 = vsyncadd [#allocation10], 0
      %s1895 = sshll.u32 [#allocation9], 4
      %s1896 = int_to_ptr.vmem [resolvable:$true] %s1895
      %s1897 = sshll.u32 %s21, 4
      %s1898 = int_to_ptr.hbm [resolvable:$true] %s1897
      %1903 = dma.vmem_to_hbm [thread:$0]  %s1896, 384, %s1898, [#allocation10], 128, 128, 8
    $region101: #{model_forward.1} parent=1 // pred_fallthru
      _
    // Predicated region
    $region102: #{model_forward.1} parent=1 // pred_check
      _
    $region103: #{model_forward.1} parent=1 // pred_check_branch
      %1905 = sbr.rel (0) target = $region105
    $region104: #{model_forward.1} parent=1 // pred_region
      %1907 = vsyncadd [#allocation10], 0
      %s1909 = sshll.u32 [#allocation11], 4
      %s1910 = int_to_ptr.vmem [resolvable:$true] %s1909
      %s1911 = sshll.u32 %s22, 4
      %s1912 = int_to_ptr.hbm [resolvable:$true] %s1911
      %1914 = dma.vmem_to_hbm [thread:$0]  %s1910, 16, %s1912, [#allocation10]
    $region105: #{model_forward.1} parent=1 // pred_fallthru
      _
    // Predicated region
    $region106: #{model_forward.1} parent=1 // pred_check
      _
    $region107: #{model_forward.1} parent=1 // pred_check_branch
      %1916 = sbr.rel (0) target = $region109
    $region108: #{model_forward.1} parent=1 // pred_region
      %1918 = dma.done [#allocation3], 256
    $region109: #{model_forward.1} parent=1 // pred_fallthru
      _
    // Predicated region
    $region110: #{model_forward.1} parent=1 // pred_check
      _
    $region111: #{model_forward.1} parent=1 // pred_check_branch
      %1920 = sbr.rel (0) target = $region113
    $region112: #{model_forward.1} parent=1 // pred_region
      %1922 = dma.done [#allocation10], 384
    $region113: #{model_forward.1} parent=1 // pred_fallthru
      _
    // Predicated region
    $region114: #{model_forward.1} parent=1 // pred_check
      _
    $region115: #{model_forward.1} parent=1 // pred_check_branch
      %1924 = sbr.rel (0) target = $region117
    $region116: #{model_forward.1} parent=1 // pred_region
      %1926 = dma.done [#allocation10], 16
    $region117: #{model_forward.1} parent=1 // pred_fallthru
      _
    %1927 = vsyncpa [#allocation3], 1
    %1928 = vsyncpa [#allocation10], 1
    %1929 = vsyncpa [#allocation4], 1
    %1930 = vsyncpa [#allocation6], 1

</llo_original>
